<compile_context>
chip_gen: v5e
topology: v5e:2x2
jax: 0.10.0
libtpu: 0.0.40
codegen_flags: <defaults>
</compile_context>

<pallas_src>
import numpy as np
import jax
import jax.numpy as jnp
from jax import lax
from jax.experimental import pallas as pl
from jax.experimental.pallas import tpu as pltpu

_SQRT_HALF = 0.7071067811865476
_LANE = 128
_SUBLANE = 8


def _cal_conv_padding(kernel_size, dilation_rate=1):
    return int(dilation_rate * (kernel_size - 1) / 2)


def _round_up(x, m):
    return (x + m - 1) // m * m


def _erf_approx(x):
    # Abramowitz & Stegun 7.1.26, |err| <= 1.5e-7. Uses an exact divide: the
    # previous pl.reciprocal(..., approx=True) EUP path cost ~1e-2 of end-to-end
    # accuracy once amplified by the GroupNorm normalization.
    p = 0.3275911
    a1, a2, a3, a4, a5 = (0.254829592, -0.284496736, 1.421413741,
                          -1.453152027, 1.061405429)
    ax = jnp.abs(x)
    t = 1.0 / (1.0 + p * ax)
    poly = ((((a5 * t + a4) * t + a3) * t + a2) * t + a1) * t
    y = 1.0 - poly * jnp.exp(-ax * ax)
    return jnp.where(x >= 0.0, y, -y)


def _gelu_exact(x):
    return 0.5 * x * (1.0 + _erf_approx(x * _SQRT_HALF))


def _make_tokenizer_kernel(n_layers):
    """Stack of [Conv1d-as-matmul -> GroupNorm -> exact GELU] on one row tile."""

    def kernel(x_ref, *refs):
        out_ref = refs[-1]
        h = x_ref[...].astype(jnp.float32)
        for j in range(n_layers):
            m_ref, b_ref, a_ref, r_ref = refs[4 * j:4 * j + 4]
            # Conv1d as a lane-dense Toeplitz matmul: bf16 operands (MXU-native
            # on v5e/v6e/v7x), f32 accumulation, f32 bias.
            y = jnp.dot(h.astype(m_ref.dtype), m_ref[...],
                        preferred_element_type=jnp.float32) + b_ref[...]
            # GroupNorm(eps=1e-5, weight=1, bias=0) via factored pooling:
            #   A (F_pad, G_pad) averages each group, R (G_pad, F_pad) broadcasts
            #   group stats back to every feature. Stats stay f32 (their flops are
            #   ~G/F of the conv matmul) and the variance is centred (two-pass) to
            #   avoid E[y^2]-mean^2 cancellation. Padded lanes/groups stay 0.
            mean_g = jnp.dot(y, a_ref[...], preferred_element_type=jnp.float32)
            mean_f = jnp.dot(mean_g, r_ref[...], preferred_element_type=jnp.float32)
            d = y - mean_f
            var_g = jnp.dot(d * d, a_ref[...], preferred_element_type=jnp.float32)
            v = var_g + 1e-5
            r0 = lax.rsqrt(v)
            inv_g = r0 * (1.5 - 0.5 * v * r0 * r0)   # one NR step: exact regardless of EUP ulp
            inv_f = jnp.dot(inv_g, r_ref[...], preferred_element_type=jnp.float32)
            # GELU(approximate='none'); all elementwise math stays f32 (the v5e
            # VPU/EUP have no bf16 path), only MXU operands are bf16.
            h = _gelu_exact(d * inv_f)
        out_ref[...] = h.astype(out_ref.dtype)

    return kernel


# --------------------------- glue (plain JAX / numpy) ---------------------------

def init_conv_params(key, n_filters, kernel_sizes):
    """Deterministic Conv1d weights/biases (torch-style uniform init scale)."""
    layers = []
    c_in = 1
    for c_out, k in zip(n_filters, kernel_sizes):
        assert c_out % 2 == 0
        key, kw, kb = jax.random.split(key, 3)
        bound = 1.0 / np.sqrt(c_in * k)
        w = jax.random.uniform(kw, (c_out, c_in, k), jnp.float32, -bound, bound)
        b = jax.random.uniform(kb, (c_out,), jnp.float32, -bound, bound)
        layers.append((w, b))
        c_in = c_out
    return layers


def conv_as_toeplitz(w, b, l_in, stride, pad, f_in):
    """Dense M such that flatten(conv1d(x)) = flatten(x)[:f_in] @ M (+ bias)."""
    c_out, c_in, k = w.shape
    l_out = (l_in + 2 * pad - k) // stride + 1
    f_out = c_out * l_out
    f_out_pad = _round_up(f_out, _LANE)
    m = np.zeros((f_in, f_out_pad), np.float32)
    w_np = np.asarray(w)
    for co in range(c_out):
        for l in range(l_out):
            for ci in range(c_in):
                for kk in range(k):
                    pos = l * stride + kk - pad
                    if 0 <= pos < l_in:
                        m[ci * l_in + pos, co * l_out + l] += w_np[co, ci, kk]
    b_pad = np.zeros((1, f_out_pad), np.float32)
    b_pad[0, :f_out] = np.repeat(np.asarray(b), l_out)
    return m, b_pad, l_out, f_out, f_out_pad


def group_pool_mats(c_out, l_out, n_groups, f_pad):
    """A: (f_pad, g_pad) per-group averaging; R: (g_pad, f_pad) broadcast-back."""
    f = c_out * l_out
    ch_per_group = c_out // n_groups
    gs = ch_per_group * l_out
    g_pad = _round_up(n_groups, _LANE)
    grp = np.repeat(np.arange(c_out) // ch_per_group, l_out)
    a = np.zeros((f_pad, g_pad), np.float32)
    r = np.zeros((g_pad, f_pad), np.float32)
    a[np.arange(f), grp] = 1.0 / float(gs)
    r[grp, np.arange(f)] = 1.0
    return a, r


def _vmem_capacity_bytes():
    try:
        return int(pltpu.get_tpu_info().vmem_capacity_bytes)
    except Exception:
        return 64 * 1024 * 1024      # conservative default (v7x per-core VMEM)


def _pick_row_tile(n, f_max_pad, weight_bytes, vmem_budget_bytes):
    """Rows per grid step, derived from a VMEM budget (generation-aware)."""
    per_row = 10 * f_max_pad * 4                       # ~live f32 slabs per row
    avail = max(vmem_budget_bytes - 2 * weight_bytes,  # constants are double-buffered
                _SUBLANE * per_row)
    cap = min(max(avail // per_row, _SUBLANE), 1024)
    if n <= cap:                                       # whole problem in one grid step
        return _round_up(n, _SUBLANE)
    # keep the MXU M-dim >=128 (lane-friendly multiple of 128) while leaving
    # >=4 grid steps so row-tile DMAs pipeline / both v7x TensorCores get work.
    tile = min(cap, max(n // 4, _LANE))
    tile = max(_SUBLANE, (tile // _SUBLANE) * _SUBLANE)
    if tile >= _LANE:
        tile = (tile // _LANE) * _LANE
    return tile


def patch_tokenizer_forward(x, conv_params, kernel_sizes, n_strides, *,
                            conv_matmul_dtype=jnp.bfloat16,
                            row_tile=None, vmem_budget_bytes=None):
    """Pallas forward of PatchTokenizer: X (B, C, S, seg_len) -> (B, C, S, d_model)."""
    b_, c_, s_, seg_len = x.shape
    n = b_ * c_ * s_
    # Feed raw rows directly (no zero-padded HBM restaging): a full-extent
    # last-dim BlockSpec of width seg_len is legal, saving one HBM read+write.
    x2 = x.reshape(n, seg_len).astype(jnp.float32)

    # --- per-layer constants (numpy glue, built once outside the hot path) ---
    weights = []
    l_in, f_in = seg_len, seg_len
    f_out, f_out_pad = seg_len, seg_len
    for (w, bias), k, stride in zip(conv_params, kernel_sizes, n_strides):
        pad = _cal_conv_padding(k)
        m, b_flat, l_out, f_out, f_out_pad = conv_as_toeplitz(
            w, bias, l_in, stride, pad, f_in)
        c_out = w.shape[0]
        n_groups = c_out // 2
        a, r = group_pool_mats(c_out, l_out, n_groups, f_out_pad)
        weights.append((jnp.asarray(m, conv_matmul_dtype),   # bf16 MXU operand
                        jnp.asarray(b_flat),                  # f32 bias
                        jnp.asarray(a), jnp.asarray(r)))      # f32 stats path
        l_in, f_in = l_out, f_out_pad
    # TODO(synk): at realistic Brant scale (seg_len ~ 1500) the dense Toeplitz
    # should be replaced by an im2col/banded conv or K-tiled over an 'arbitrary'
    # reduction grid axis with an f32 VMEM accumulator; dense M does not scale.

    f_max_pad = max(_round_up(seg_len, _LANE),
                    max(wt[0].shape[1] for wt in weights))
    weight_bytes = sum(int(np.prod(t.shape)) * t.dtype.itemsize
                       for wt in weights for t in wt)

    vmem_cap = _vmem_capacity_bytes()
    if vmem_budget_bytes is None:
        vmem_budget_bytes = vmem_cap // 2
    if row_tile is None:
        row_tile = _pick_row_tile(n, f_max_pad, weight_bytes, vmem_budget_bytes)

    n_pad = _round_up(n, row_tile)
    if n_pad != n:
        x2 = jnp.pad(x2, ((0, n_pad - n), (0, 0)))   # tail rows, sliced off below

    flat_inputs = [x2]
    in_specs = [pl.BlockSpec((row_tile, seg_len), lambda i: (i, 0))]
    for wt in weights:
        for t in wt:
            flat_inputs.append(t)
            # Constant blocks: index map (0, 0) keeps them VMEM-resident across
            # grid steps (no per-step re-DMA). On v7x's 64 MiB VMEM they could
            # additionally be single-buffered (pipeline_mode=pl.Buffered(1)) or
            # staged once into persistent VMEM scratch.
            in_specs.append(pl.BlockSpec(t.shape, lambda i: (0, 0)))

    kernel = _make_tokenizer_kernel(len(conv_params))
    out = pl.pallas_call(
        kernel,
        out_shape=jax.ShapeDtypeStruct((n_pad, f_out_pad), jnp.float32),
        grid_spec=pltpu.PrefetchScalarGridSpec(
            num_scalar_prefetch=0,
            grid=(n_pad // row_tile,),
            in_specs=in_specs,
            out_specs=pl.BlockSpec((row_tile, f_out_pad), lambda i: (i, 0)),
        ),
        compiler_params=pltpu.CompilerParams(
            dimension_semantics=("parallel",),
            vmem_limit_bytes=min(int(vmem_cap * 0.8), 100 * 1024 * 1024),
        ),
    )(*flat_inputs)
    # (n_pad, F_pad) -> strip row/lane padding -> (batch, n_channels, n_segs, d_model)
    return out[:n, :f_out].reshape(b_, c_, s_, f_out)


def reference_forward(x, conv_params, kernel_sizes, n_strides):
    """Pure-JAX reference of the PyTorch forward."""
    b_, c_, s_, seg_len = x.shape
    h = x.reshape(-1, 1, seg_len).astype(jnp.float32)
    for (w, bias), k, stride in zip(conv_params, kernel_sizes, n_strides):
        pad = _cal_conv_padding(k)
        h = lax.conv_general_dilated(
            h, w, window_strides=(stride,), padding=[(pad, pad)],
            dimension_numbers=("NCH", "OIH", "NCH"))
        h = h + bias[None, :, None]
        c_out = w.shape[0]
        n_groups = c_out // 2
        nn_, co_, lo_ = h.shape
        hg = h.reshape(nn_, n_groups, -1)
        mean = hg.mean(-1, keepdims=True)
        var = hg.var(-1, keepdims=True)
        hg = (hg - mean) * lax.rsqrt(var + 1e-5)
        h = hg.reshape(nn_, co_, lo_)
        h = 0.5 * h * (1.0 + jax.scipy.special.erf(h * _SQRT_HALF))
    return h.reshape(b_, c_, s_, -1)


if __name__ == "__main__":
    # Module hyper-params (the DotDict `params` of PatchTokenizer).
    n_filters = [8, 16]
    kernel_sizes = [3, 3]
    n_strides = [2, 2]

    key = jax.random.PRNGKey(0)
    k_x, k_p = jax.random.split(key)
    # X: (batch=2, n_channels=4, n_segs=8, seg_len=16)
    x = jax.random.normal(k_x, (2, 4, 8, 16), jnp.float32)
    conv_params = init_conv_params(k_p, n_filters, kernel_sizes)

    ref = jax.block_until_ready(
        reference_forward(x, conv_params, kernel_sizes, n_strides))

    # 1) f32 MXU operands: tight accuracy check against the reference.
    out_f32 = jax.block_until_ready(patch_tokenizer_forward(
        x, conv_params, kernel_sizes, n_strides,
        conv_matmul_dtype=jnp.float32))
    assert out_f32.shape == (2, 4, 8, 64), out_f32.shape
    err_f32 = float(jnp.max(jnp.abs(out_f32 - ref)))
    assert err_f32 < 2e-3, err_f32

    # 2) Default path (bf16 MXU operands, f32 accumulation/stats): bf16-level
    #    tolerance since GroupNorm amplifies the operand-rounding error.
    out_bf16 = jax.block_until_ready(patch_tokenizer_forward(
        x, conv_params, kernel_sizes, n_strides))
    assert out_bf16.shape == (2, 4, 8, 64), out_bf16.shape
    err_bf16_mean = float(jnp.mean(jnp.abs(out_bf16 - ref)))
    err_bf16_max = float(jnp.max(jnp.abs(out_bf16 - ref)))
    assert err_bf16_mean < 2e-2 and err_bf16_max < 5e-1, (err_bf16_mean, err_bf16_max)

    print("KERNEL_OK")
</pallas_src>

<mosaic_0001>
module attributes {stable_mosaic.version = 11 : i64} {
  func.func @kernel(%arg0: i32, %arg1: memref<64x16xf32, #tpu.memory_space<vmem>>, %arg2: memref<16x128xf32, #tpu.memory_space<vmem>>, %arg3: memref<1x128xf32, #tpu.memory_space<vmem>>, %arg4: memref<128x128xf32, #tpu.memory_space<vmem>>, %arg5: memref<128x128xf32, #tpu.memory_space<vmem>>, %arg6: memref<128x128xf32, #tpu.memory_space<vmem>>, %arg7: memref<1x128xf32, #tpu.memory_space<vmem>>, %arg8: memref<128x128xf32, #tpu.memory_space<vmem>>, %arg9: memref<128x128xf32, #tpu.memory_space<vmem>>, %arg10: memref<64x128xf32, #tpu.memory_space<vmem>>) attributes {dimension_semantics = [#tpu.dimension_semantics<parallel>], iteration_bounds = array<i64: 1>, scalar_prefetch = 0 : i64, scratch_operands = 0 : i64, tpu.core_type = #tpu.core_type<tc>, window_params = [{transform_indices = @transform_0, window_bounds = array<i64: 64, 16>}, {pipeline_mode = #tpu.pipeline_mode<synchronous>, transform_indices = @transform_1, window_bounds = array<i64: 16, 128>}, {pipeline_mode = #tpu.pipeline_mode<synchronous>, transform_indices = @transform_2, window_bounds = array<i64: 1, 128>}, {pipeline_mode = #tpu.pipeline_mode<synchronous>, transform_indices = @transform_3, window_bounds = array<i64: 128, 128>}, {pipeline_mode = #tpu.pipeline_mode<synchronous>, transform_indices = @transform_4, window_bounds = array<i64: 128, 128>}, {pipeline_mode = #tpu.pipeline_mode<synchronous>, transform_indices = @transform_5, window_bounds = array<i64: 128, 128>}, {pipeline_mode = #tpu.pipeline_mode<synchronous>, transform_indices = @transform_6, window_bounds = array<i64: 1, 128>}, {pipeline_mode = #tpu.pipeline_mode<synchronous>, transform_indices = @transform_7, window_bounds = array<i64: 128, 128>}, {pipeline_mode = #tpu.pipeline_mode<synchronous>, transform_indices = @transform_8, window_bounds = array<i64: 128, 128>}, {transform_indices = @transform_9, window_bounds = array<i64: 64, 128>}]} {
    %c0 = arith.constant 0 : index
    %c0_0 = arith.constant 0 : index
    %0 = vector.load %arg1[%c0, %c0_0] : memref<64x16xf32, #tpu.memory_space<vmem>>, vector<64x16xf32>
    %c0_1 = arith.constant 0 : index
    %c0_2 = arith.constant 0 : index
    %1 = vector.load %arg2[%c0_1, %c0_2] : memref<16x128xf32, #tpu.memory_space<vmem>>, vector<16x128xf32>
    %cst = arith.constant dense<0.000000e+00> : vector<64x128xf32>
    %2 = tpu.matmul %0, %1, %cst {dimension_numbers = #tpu.dot_dimension_numbers<[1], [0], [0], [1], [0, 0, 1, 1], [], []>} : vector<64x16xf32>, vector<16x128xf32>, vector<64x128xf32> -> vector<64x128xf32>
    %c0_3 = arith.constant 0 : index
    %c0_4 = arith.constant 0 : index
    %3 = vector.load %arg3[%c0_3, %c0_4] : memref<1x128xf32, #tpu.memory_space<vmem>>, vector<1x128xf32>
    %4 = vector.broadcast %3 : vector<1x128xf32> to vector<64x128xf32>
    %5 = arith.addf %2, %4 : vector<64x128xf32>
    %c0_5 = arith.constant 0 : index
    %c0_6 = arith.constant 0 : index
    %6 = vector.load %arg4[%c0_5, %c0_6] : memref<128x128xf32, #tpu.memory_space<vmem>>, vector<128x128xf32>
    %cst_7 = arith.constant dense<0.000000e+00> : vector<64x128xf32>
    %7 = tpu.matmul %5, %6, %cst_7 {dimension_numbers = #tpu.dot_dimension_numbers<[1], [0], [0], [1], [0, 0, 1, 1], [], []>} : vector<64x128xf32>, vector<128x128xf32>, vector<64x128xf32> -> vector<64x128xf32>
    %c0_8 = arith.constant 0 : index
    %c0_9 = arith.constant 0 : index
    %8 = vector.load %arg5[%c0_8, %c0_9] : memref<128x128xf32, #tpu.memory_space<vmem>>, vector<128x128xf32>
    %cst_10 = arith.constant dense<0.000000e+00> : vector<64x128xf32>
    %9 = tpu.matmul %7, %8, %cst_10 {dimension_numbers = #tpu.dot_dimension_numbers<[1], [0], [0], [1], [0, 0, 1, 1], [], []>} : vector<64x128xf32>, vector<128x128xf32>, vector<64x128xf32> -> vector<64x128xf32>
    %10 = arith.subf %5, %9 : vector<64x128xf32>
    %11 = arith.mulf %10, %10 : vector<64x128xf32>
    %c0_11 = arith.constant 0 : index
    %c0_12 = arith.constant 0 : index
    %12 = vector.load %arg4[%c0_11, %c0_12] : memref<128x128xf32, #tpu.memory_space<vmem>>, vector<128x128xf32>
    %cst_13 = arith.constant dense<0.000000e+00> : vector<64x128xf32>
    %13 = tpu.matmul %11, %12, %cst_13 {dimension_numbers = #tpu.dot_dimension_numbers<[1], [0], [0], [1], [0, 0, 1, 1], [], []>} : vector<64x128xf32>, vector<128x128xf32>, vector<64x128xf32> -> vector<64x128xf32>
    %cst_14 = arith.constant 9.99999974E-6 : f32
    %14 = vector.broadcast %cst_14 : f32 to vector<64x128xf32>
    %15 = arith.addf %13, %14 : vector<64x128xf32>
    %16 = math.rsqrt %15 : vector<64x128xf32>
    %cst_15 = arith.constant 5.000000e-01 : f32
    %17 = vector.broadcast %cst_15 : f32 to vector<64x128xf32>
    %18 = arith.mulf %17, %15 : vector<64x128xf32>
    %19 = arith.mulf %18, %16 : vector<64x128xf32>
    %20 = arith.mulf %19, %16 : vector<64x128xf32>
    %cst_16 = arith.constant 1.500000e+00 : f32
    %21 = vector.broadcast %cst_16 : f32 to vector<64x128xf32>
    %22 = arith.subf %21, %20 : vector<64x128xf32>
    %23 = arith.mulf %16, %22 : vector<64x128xf32>
    %c0_17 = arith.constant 0 : index
    %c0_18 = arith.constant 0 : index
    %24 = vector.load %arg5[%c0_17, %c0_18] : memref<128x128xf32, #tpu.memory_space<vmem>>, vector<128x128xf32>
    %cst_19 = arith.constant dense<0.000000e+00> : vector<64x128xf32>
    %25 = tpu.matmul %23, %24, %cst_19 {dimension_numbers = #tpu.dot_dimension_numbers<[1], [0], [0], [1], [0, 0, 1, 1], [], []>} : vector<64x128xf32>, vector<128x128xf32>, vector<64x128xf32> -> vector<64x128xf32>
    %26 = arith.mulf %10, %25 : vector<64x128xf32>
    %cst_20 = arith.constant 5.000000e-01 : f32
    %27 = vector.broadcast %cst_20 : f32 to vector<64x128xf32>
    %28 = arith.mulf %27, %26 : vector<64x128xf32>
    %cst_21 = arith.constant 0.707106769 : f32
    %29 = vector.broadcast %cst_21 : f32 to vector<64x128xf32>
    %30 = arith.mulf %26, %29 : vector<64x128xf32>
    %31 = math.absf %30 : vector<64x128xf32>
    %cst_22 = arith.constant 0.327591091 : f32
    %32 = vector.broadcast %cst_22 : f32 to vector<64x128xf32>
    %33 = arith.mulf %32, %31 : vector<64x128xf32>
    %cst_23 = arith.constant 1.000000e+00 : f32
    %34 = vector.broadcast %cst_23 : f32 to vector<64x128xf32>
    %35 = arith.addf %34, %33 : vector<64x128xf32>
    %cst_24 = arith.constant 1.000000e+00 : f32
    %36 = vector.broadcast %cst_24 : f32 to vector<64x128xf32>
    %37 = arith.divf %36, %35 : vector<64x128xf32>
    %cst_25 = arith.constant 1.06140542 : f32
    %38 = vector.broadcast %cst_25 : f32 to vector<64x128xf32>
    %39 = arith.mulf %38, %37 : vector<64x128xf32>
    %cst_26 = arith.constant -1.45315206 : f32
    %40 = vector.broadcast %cst_26 : f32 to vector<64x128xf32>
    %41 = arith.addf %39, %40 : vector<64x128xf32>
    %42 = arith.mulf %41, %37 : vector<64x128xf32>
    %cst_27 = arith.constant 1.42141378 : f32
    %43 = vector.broadcast %cst_27 : f32 to vector<64x128xf32>
    %44 = arith.addf %42, %43 : vector<64x128xf32>
    %45 = arith.mulf %44, %37 : vector<64x128xf32>
    %cst_28 = arith.constant -0.284496725 : f32
    %46 = vector.broadcast %cst_28 : f32 to vector<64x128xf32>
    %47 = arith.addf %45, %46 : vector<64x128xf32>
    %48 = arith.mulf %47, %37 : vector<64x128xf32>
    %cst_29 = arith.constant 0.254829586 : f32
    %49 = vector.broadcast %cst_29 : f32 to vector<64x128xf32>
    %50 = arith.addf %48, %49 : vector<64x128xf32>
    %51 = arith.mulf %50, %37 : vector<64x128xf32>
    %cst_30 = arith.constant 0.000000e+00 : f32
    %52 = vector.broadcast %cst_30 : f32 to vector<64x128xf32>
    %53 = arith.subf %52, %31 : vector<64x128xf32>
    %54 = arith.mulf %53, %31 : vector<64x128xf32>
    %55 = math.exp %54 : vector<64x128xf32>
    %56 = arith.mulf %51, %55 : vector<64x128xf32>
    %cst_31 = arith.constant 1.000000e+00 : f32
    %57 = vector.broadcast %cst_31 : f32 to vector<64x128xf32>
    %58 = arith.subf %57, %56 : vector<64x128xf32>
    %cst_32 = arith.constant 0.000000e+00 : f32
    %59 = vector.broadcast %cst_32 : f32 to vector<64x128xf32>
    %60 = arith.cmpf oge, %30, %59 : vector<64x128xf32>
    %cst_33 = arith.constant 0.000000e+00 : f32
    %61 = vector.broadcast %cst_33 : f32 to vector<64x128xf32>
    %62 = arith.subf %61, %58 : vector<64x128xf32>
    %63 = arith.select %60, %58, %62 : vector<64x128xi1>, vector<64x128xf32>
    %cst_34 = arith.constant 1.000000e+00 : f32
    %64 = vector.broadcast %cst_34 : f32 to vector<64x128xf32>
    %65 = arith.addf %64, %63 : vector<64x128xf32>
    %66 = arith.mulf %28, %65 : vector<64x128xf32>
    %c0_35 = arith.constant 0 : index
    %c0_36 = arith.constant 0 : index
    %67 = vector.load %arg6[%c0_35, %c0_36] : memref<128x128xf32, #tpu.memory_space<vmem>>, vector<128x128xf32>
    %cst_37 = arith.constant dense<0.000000e+00> : vector<64x128xf32>
    %68 = tpu.matmul %66, %67, %cst_37 {dimension_numbers = #tpu.dot_dimension_numbers<[1], [0], [0], [1], [0, 0, 1, 1], [], []>} : vector<64x128xf32>, vector<128x128xf32>, vector<64x128xf32> -> vector<64x128xf32>
    %c0_38 = arith.constant 0 : index
    %c0_39 = arith.constant 0 : index
    %69 = vector.load %arg7[%c0_38, %c0_39] : memref<1x128xf32, #tpu.memory_space<vmem>>, vector<1x128xf32>
    %70 = vector.broadcast %69 : vector<1x128xf32> to vector<64x128xf32>
    %71 = arith.addf %68, %70 : vector<64x128xf32>
    %c0_40 = arith.constant 0 : index
    %c0_41 = arith.constant 0 : index
    %72 = vector.load %arg8[%c0_40, %c0_41] : memref<128x128xf32, #tpu.memory_space<vmem>>, vector<128x128xf32>
    %cst_42 = arith.constant dense<0.000000e+00> : vector<64x128xf32>
    %73 = tpu.matmul %71, %72, %cst_42 {dimension_numbers = #tpu.dot_dimension_numbers<[1], [0], [0], [1], [0, 0, 1, 1], [], []>} : vector<64x128xf32>, vector<128x128xf32>, vector<64x128xf32> -> vector<64x128xf32>
    %c0_43 = arith.constant 0 : index
    %c0_44 = arith.constant 0 : index
    %74 = vector.load %arg9[%c0_43, %c0_44] : memref<128x128xf32, #tpu.memory_space<vmem>>, vector<128x128xf32>
    %cst_45 = arith.constant dense<0.000000e+00> : vector<64x128xf32>
    %75 = tpu.matmul %73, %74, %cst_45 {dimension_numbers = #tpu.dot_dimension_numbers<[1], [0], [0], [1], [0, 0, 1, 1], [], []>} : vector<64x128xf32>, vector<128x128xf32>, vector<64x128xf32> -> vector<64x128xf32>
    %76 = arith.subf %71, %75 : vector<64x128xf32>
    %77 = arith.mulf %76, %76 : vector<64x128xf32>
    %c0_46 = arith.constant 0 : index
    %c0_47 = arith.constant 0 : index
    %78 = vector.load %arg8[%c0_46, %c0_47] : memref<128x128xf32, #tpu.memory_space<vmem>>, vector<128x128xf32>
    %cst_48 = arith.constant dense<0.000000e+00> : vector<64x128xf32>
    %79 = tpu.matmul %77, %78, %cst_48 {dimension_numbers = #tpu.dot_dimension_numbers<[1], [0], [0], [1], [0, 0, 1, 1], [], []>} : vector<64x128xf32>, vector<128x128xf32>, vector<64x128xf32> -> vector<64x128xf32>
    %cst_49 = arith.constant 9.99999974E-6 : f32
    %80 = vector.broadcast %cst_49 : f32 to vector<64x128xf32>
    %81 = arith.addf %79, %80 : vector<64x128xf32>
    %82 = math.rsqrt %81 : vector<64x128xf32>
    %cst_50 = arith.constant 5.000000e-01 : f32
    %83 = vector.broadcast %cst_50 : f32 to vector<64x128xf32>
    %84 = arith.mulf %83, %81 : vector<64x128xf32>
    %85 = arith.mulf %84, %82 : vector<64x128xf32>
    %86 = arith.mulf %85, %82 : vector<64x128xf32>
    %cst_51 = arith.constant 1.500000e+00 : f32
    %87 = vector.broadcast %cst_51 : f32 to vector<64x128xf32>
    %88 = arith.subf %87, %86 : vector<64x128xf32>
    %89 = arith.mulf %82, %88 : vector<64x128xf32>
    %c0_52 = arith.constant 0 : index
    %c0_53 = arith.constant 0 : index
    %90 = vector.load %arg9[%c0_52, %c0_53] : memref<128x128xf32, #tpu.memory_space<vmem>>, vector<128x128xf32>
    %cst_54 = arith.constant dense<0.000000e+00> : vector<64x128xf32>
    %91 = tpu.matmul %89, %90, %cst_54 {dimension_numbers = #tpu.dot_dimension_numbers<[1], [0], [0], [1], [0, 0, 1, 1], [], []>} : vector<64x128xf32>, vector<128x128xf32>, vector<64x128xf32> -> vector<64x128xf32>
    %92 = arith.mulf %76, %91 : vector<64x128xf32>
    %cst_55 = arith.constant 5.000000e-01 : f32
    %93 = vector.broadcast %cst_55 : f32 to vector<64x128xf32>
    %94 = arith.mulf %93, %92 : vector<64x128xf32>
    %cst_56 = arith.constant 0.707106769 : f32
    %95 = vector.broadcast %cst_56 : f32 to vector<64x128xf32>
    %96 = arith.mulf %92, %95 : vector<64x128xf32>
    %97 = math.absf %96 : vector<64x128xf32>
    %cst_57 = arith.constant 0.327591091 : f32
    %98 = vector.broadcast %cst_57 : f32 to vector<64x128xf32>
    %99 = arith.mulf %98, %97 : vector<64x128xf32>
    %cst_58 = arith.constant 1.000000e+00 : f32
    %100 = vector.broadcast %cst_58 : f32 to vector<64x128xf32>
    %101 = arith.addf %100, %99 : vector<64x128xf32>
    %cst_59 = arith.constant 1.000000e+00 : f32
    %102 = vector.broadcast %cst_59 : f32 to vector<64x128xf32>
    %103 = arith.divf %102, %101 : vector<64x128xf32>
    %cst_60 = arith.constant 1.06140542 : f32
    %104 = vector.broadcast %cst_60 : f32 to vector<64x128xf32>
    %105 = arith.mulf %104, %103 : vector<64x128xf32>
    %cst_61 = arith.constant -1.45315206 : f32
    %106 = vector.broadcast %cst_61 : f32 to vector<64x128xf32>
    %107 = arith.addf %105, %106 : vector<64x128xf32>
    %108 = arith.mulf %107, %103 : vector<64x128xf32>
    %cst_62 = arith.constant 1.42141378 : f32
    %109 = vector.broadcast %cst_62 : f32 to vector<64x128xf32>
    %110 = arith.addf %108, %109 : vector<64x128xf32>
    %111 = arith.mulf %110, %103 : vector<64x128xf32>
    %cst_63 = arith.constant -0.284496725 : f32
    %112 = vector.broadcast %cst_63 : f32 to vector<64x128xf32>
    %113 = arith.addf %111, %112 : vector<64x128xf32>
    %114 = arith.mulf %113, %103 : vector<64x128xf32>
    %cst_64 = arith.constant 0.254829586 : f32
    %115 = vector.broadcast %cst_64 : f32 to vector<64x128xf32>
    %116 = arith.addf %114, %115 : vector<64x128xf32>
    %117 = arith.mulf %116, %103 : vector<64x128xf32>
    %cst_65 = arith.constant 0.000000e+00 : f32
    %118 = vector.broadcast %cst_65 : f32 to vector<64x128xf32>
    %119 = arith.subf %118, %97 : vector<64x128xf32>
    %120 = arith.mulf %119, %97 : vector<64x128xf32>
    %121 = math.exp %120 : vector<64x128xf32>
    %122 = arith.mulf %117, %121 : vector<64x128xf32>
    %cst_66 = arith.constant 1.000000e+00 : f32
    %123 = vector.broadcast %cst_66 : f32 to vector<64x128xf32>
    %124 = arith.subf %123, %122 : vector<64x128xf32>
    %cst_67 = arith.constant 0.000000e+00 : f32
    %125 = vector.broadcast %cst_67 : f32 to vector<64x128xf32>
    %126 = arith.cmpf oge, %96, %125 : vector<64x128xf32>
    %cst_68 = arith.constant 0.000000e+00 : f32
    %127 = vector.broadcast %cst_68 : f32 to vector<64x128xf32>
    %128 = arith.subf %127, %124 : vector<64x128xf32>
    %129 = arith.select %126, %124, %128 : vector<64x128xi1>, vector<64x128xf32>
    %cst_69 = arith.constant 1.000000e+00 : f32
    %130 = vector.broadcast %cst_69 : f32 to vector<64x128xf32>
    %131 = arith.addf %130, %129 : vector<64x128xf32>
    %132 = arith.mulf %94, %131 : vector<64x128xf32>
    %c0_70 = arith.constant 0 : index
    %c0_71 = arith.constant 0 : index
    %133 = vector.load %arg10[%c0_70, %c0_71] : memref<64x128xf32, #tpu.memory_space<vmem>>, vector<64x128xf32>
    tpu.vector_store %arg10[%c0_70, %c0_71], %132 {strides = array<i32>} : memref<64x128xf32, #tpu.memory_space<vmem>>, vector<64x128xf32>,
    return
  }
  func.func @transform_0(%arg0: i32) -> (i32, i32) {
    %c0_i32 = arith.constant 0 : i32
    %c0_i32_0 = arith.constant 0 : i32
    return %arg0, %c0_i32 : i32, i32
  }
  func.func @transform_1(%arg0: i32) -> (i32, i32) {
    %c0_i32 = arith.constant 0 : i32
    %c0_i32_0 = arith.constant 0 : i32
    %c0_i32_1 = arith.constant 0 : i32
    return %c0_i32, %c0_i32_0 : i32, i32
  }
  func.func @transform_2(%arg0: i32) -> (i32, i32) {
    %c0_i32 = arith.constant 0 : i32
    %c0_i32_0 = arith.constant 0 : i32
    %c0_i32_1 = arith.constant 0 : i32
    return %c0_i32, %c0_i32_0 : i32, i32
  }
  func.func @transform_3(%arg0: i32) -> (i32, i32) {
    %c0_i32 = arith.constant 0 : i32
    %c0_i32_0 = arith.constant 0 : i32
    %c0_i32_1 = arith.constant 0 : i32
    return %c0_i32, %c0_i32_0 : i32, i32
  }
  func.func @transform_4(%arg0: i32) -> (i32, i32) {
    %c0_i32 = arith.constant 0 : i32
    %c0_i32_0 = arith.constant 0 : i32
    %c0_i32_1 = arith.constant 0 : i32
    return %c0_i32, %c0_i32_0 : i32, i32
  }
  func.func @transform_5(%arg0: i32) -> (i32, i32) {
    %c0_i32 = arith.constant 0 : i32
    %c0_i32_0 = arith.constant 0 : i32
    %c0_i32_1 = arith.constant 0 : i32
    return %c0_i32, %c0_i32_0 : i32, i32
  }
  func.func @transform_6(%arg0: i32) -> (i32, i32) {
    %c0_i32 = arith.constant 0 : i32
    %c0_i32_0 = arith.constant 0 : i32
    %c0_i32_1 = arith.constant 0 : i32
    return %c0_i32, %c0_i32_0 : i32, i32
  }
  func.func @transform_7(%arg0: i32) -> (i32, i32) {
    %c0_i32 = arith.constant 0 : i32
    %c0_i32_0 = arith.constant 0 : i32
    %c0_i32_1 = arith.constant 0 : i32
    return %c0_i32, %c0_i32_0 : i32, i32
  }
  func.func @transform_8(%arg0: i32) -> (i32, i32) {
    %c0_i32 = arith.constant 0 : i32
    %c0_i32_0 = arith.constant 0 : i32
    %c0_i32_1 = arith.constant 0 : i32
    return %c0_i32, %c0_i32_0 : i32, i32
  }
  func.func @transform_9(%arg0: i32) -> (i32, i32) {
    %c0_i32 = arith.constant 0 : i32
    %c0_i32_0 = arith.constant 0 : i32
    return %arg0, %c0_i32 : i32, i32
  }
}

</mosaic_0001>

<llo_original>
// kernel: tpu_custom_call.1
$region0: #{tpu_custom_call.1}
  #allocation0 [shape = 'u32[]', space=smem, size = 0x4, offset = 0x4, fixed_abs, tag = 'smem constant byte address 0x4 - core index']
  #allocation1 [shape = 'u32[72,128]{1,0:T(1,128)}', space=vmem, size = 0x9000, scoped, tag = 'internal scratch']
  %s0 = inlined_call_operand.vmem [shape: f32[64,16], index: 0, kind: input, shape index: {}]
  %s1 = inlined_call_operand.vmem [shape: f32[16,128], index: 1, kind: input, shape index: {}]
  %s2 = inlined_call_operand.vmem [shape: f32[1,128], index: 2, kind: input, shape index: {}]
  %s3 = inlined_call_operand.hbm [shape: f32[128,128], index: 3, kind: input, shape index: {}]
  %s4 = inlined_call_operand.hbm [shape: f32[128,128], index: 4, kind: input, shape index: {}]
  %s5 = inlined_call_operand.hbm [shape: f32[128,128], index: 5, kind: input, shape index: {}]
  %s6 = inlined_call_operand.vmem [shape: f32[1,128], index: 6, kind: input, shape index: {}]
  %s7 = inlined_call_operand.hbm [shape: f32[128,128], index: 7, kind: input, shape index: {}]
  %s8 = inlined_call_operand.hbm [shape: f32[128,128], index: 8, kind: input, shape index: {}]
  %s9 = inlined_call_operand.hbm [shape: f32[64,128], index: 9, kind: output, shape index: {}]
  %s10 = sld [smem:[#allocation0]]
  $region66: #{tpu_custom_call.1} parent=0
    _
  %s12 = ssub.s32 1, %s10
  %s13 = scalar_select 0, %s12, %s10
  $region1: #{tpu_custom_call.1} parent=0
    #allocation2 [shape = 'u8[65536]{0}', space=vmem, size = 0x10000, scoped, tag = 'input window, operand 3, single buffered']
    #allocation3 [shape = 's32[1]{0}', space=sflag, size = 0x4, scoped, tag = 'scoped memory for tpu_custom_call.1']
    #allocation4 [shape = 's32[1]{0}', space=sflag, size = 0x4, scoped, tag = 'scoped memory for tpu_custom_call.1']
    #allocation5 [shape = 'u8[65536]{0}', space=vmem, size = 0x10000, scoped, tag = 'input window, operand 4, single buffered']
    #allocation6 [shape = 's32[1]{0}', space=sflag, size = 0x4, scoped, tag = 'scoped memory for tpu_custom_call.1']
    #allocation7 [shape = 'u8[65536]{0}', space=vmem, size = 0x10000, scoped, tag = 'input window, operand 5, single buffered']
    #allocation8 [shape = 'u8[65536]{0}', space=vmem, size = 0x10000, scoped, tag = 'input window, operand 7, single buffered']
    #allocation9 [shape = 's32[1]{0}', space=sflag, size = 0x4, scoped, tag = 'scoped memory for tpu_custom_call.1']
    #allocation10 [shape = 'u8[65536]{0}', space=vmem, size = 0x10000, scoped, tag = 'input window, operand 8, single buffered']
    #allocation11 [shape = 'u8[32768]{0}', space=vmem, size = 0x8000, scoped, tag = 'output window, operand 0, single buffered']
    %14 = vsyncpa [#allocation3], 0
    %15 = vsyncpa [#allocation6], 0
    %16 = vsyncpa [#allocation9], 0
    %17 = vsyncpa [#allocation4], 0
    // Predicated region
    $region2: #{tpu_custom_call.1} parent=1 // pred_check
      _
    $region3: #{tpu_custom_call.1} parent=1 // pred_check_branch
      %19 = sbr.rel (0) target = $region5
    $region4: #{tpu_custom_call.1} parent=1 // pred_region
      _
    $region5: #{tpu_custom_call.1} parent=1 // pred_fallthru
      _
    // Predicated region
    $region6: #{tpu_custom_call.1} parent=1 // pred_check
      _
    $region7: #{tpu_custom_call.1} parent=1 // pred_check_branch
      %21 = sbr.rel (0) target = $region9
    $region8: #{tpu_custom_call.1} parent=1 // pred_region
      _
    $region9: #{tpu_custom_call.1} parent=1 // pred_fallthru
      _
    // Predicated region
    $region10: #{tpu_custom_call.1} parent=1 // pred_check
      _
    $region11: #{tpu_custom_call.1} parent=1 // pred_check_branch
      %23 = sbr.rel (0) target = $region13
    $region12: #{tpu_custom_call.1} parent=1 // pred_region
      _
    $region13: #{tpu_custom_call.1} parent=1 // pred_fallthru
      _
    // Predicated region
    $region14: #{tpu_custom_call.1} parent=1 // pred_check
      _
    $region15: #{tpu_custom_call.1} parent=1 // pred_check_branch
      %25 = sbr.rel (0) target = $region17
    $region16: #{tpu_custom_call.1} parent=1 // pred_region
      %27 = vsyncadd [#allocation3], 0
      %s28 = sshll.u32 %s3, 4
      %s29 = int_to_ptr.hbm [resolvable:$true] %s28
      %s30 = sshll.u32 [#allocation2], 4
      %s31 = int_to_ptr.vmem [resolvable:$true] %s30
      %36 = dma.hbm_to_vmem [thread:$0]  %s29, 2048, %s31, [#allocation3], 128, 128, 8
    $region17: #{tpu_custom_call.1} parent=1 // pred_fallthru
      _
    // Predicated region
    $region18: #{tpu_custom_call.1} parent=1 // pred_check
      _
    $region19: #{tpu_custom_call.1} parent=1 // pred_check_branch
      %38 = sbr.rel (0) target = $region21
    $region20: #{tpu_custom_call.1} parent=1 // pred_region
      %40 = vsyncadd [#allocation6], 0
      %s41 = sshll.u32 %s4, 4
      %s42 = int_to_ptr.hbm [resolvable:$true] %s41
      %s43 = sshll.u32 [#allocation5], 4
      %s44 = int_to_ptr.vmem [resolvable:$true] %s43
      %49 = dma.hbm_to_vmem [thread:$0]  %s42, 2048, %s44, [#allocation6], 128, 128, 8
    $region21: #{tpu_custom_call.1} parent=1 // pred_fallthru
      _
    // Predicated region
    $region22: #{tpu_custom_call.1} parent=1 // pred_check
      _
    $region23: #{tpu_custom_call.1} parent=1 // pred_check_branch
      %51 = sbr.rel (0) target = $region25
    $region24: #{tpu_custom_call.1} parent=1 // pred_region
      %53 = vsyncadd [#allocation6], 0
      %s54 = sshll.u32 %s5, 4
      %s55 = int_to_ptr.hbm [resolvable:$true] %s54
      %s56 = sshll.u32 [#allocation7], 4
      %s57 = int_to_ptr.vmem [resolvable:$true] %s56
      %62 = dma.hbm_to_vmem [thread:$0]  %s55, 2048, %s57, [#allocation6], 128, 128, 8
    $region25: #{tpu_custom_call.1} parent=1 // pred_fallthru
      _
    // Predicated region
    $region26: #{tpu_custom_call.1} parent=1 // pred_check
      _
    $region27: #{tpu_custom_call.1} parent=1 // pred_check_branch
      %64 = sbr.rel (0) target = $region29
    $region28: #{tpu_custom_call.1} parent=1 // pred_region
      _
    $region29: #{tpu_custom_call.1} parent=1 // pred_fallthru
      _
    // Predicated region
    $region30: #{tpu_custom_call.1} parent=1 // pred_check
      _
    $region31: #{tpu_custom_call.1} parent=1 // pred_check_branch
      %66 = sbr.rel (0) target = $region33
    $region32: #{tpu_custom_call.1} parent=1 // pred_region
      %68 = vsyncadd [#allocation9], 0
      %s69 = sshll.u32 %s7, 4
      %s70 = int_to_ptr.hbm [resolvable:$true] %s69
      %s71 = sshll.u32 [#allocation8], 4
      %s72 = int_to_ptr.vmem [resolvable:$true] %s71
      %77 = dma.hbm_to_vmem [thread:$0]  %s70, 2048, %s72, [#allocation9], 128, 128, 8
    $region33: #{tpu_custom_call.1} parent=1 // pred_fallthru
      _
    // Predicated region
    $region34: #{tpu_custom_call.1} parent=1 // pred_check
      _
    $region35: #{tpu_custom_call.1} parent=1 // pred_check_branch
      %79 = sbr.rel (0) target = $region37
    $region36: #{tpu_custom_call.1} parent=1 // pred_region
      %81 = vsyncadd [#allocation9], 0
      %s82 = sshll.u32 %s8, 4
      %s83 = int_to_ptr.hbm [resolvable:$true] %s82
      %s84 = sshll.u32 [#allocation10], 4
      %s85 = int_to_ptr.vmem [resolvable:$true] %s84
      %90 = dma.hbm_to_vmem [thread:$0]  %s83, 2048, %s85, [#allocation9], 128, 128, 8
    $region37: #{tpu_custom_call.1} parent=1 // pred_fallthru
      _
    // Predicated region
    $region38: #{tpu_custom_call.1} parent=1 // pred_check
      _
    $region39: #{tpu_custom_call.1} parent=1 // pred_check_branch
      %92 = sbr.rel (0) target = $region41
    $region40: #{tpu_custom_call.1} parent=1 // pred_region
      %94 = dma.done [#allocation3], 2048
    $region41: #{tpu_custom_call.1} parent=1 // pred_fallthru
      _
    // Predicated region
    $region42: #{tpu_custom_call.1} parent=1 // pred_check
      _
    $region43: #{tpu_custom_call.1} parent=1 // pred_check_branch
      %96 = sbr.rel (0) target = $region45
    $region44: #{tpu_custom_call.1} parent=1 // pred_region
      %98 = dma.done [#allocation6], 2048
    $region45: #{tpu_custom_call.1} parent=1 // pred_fallthru
      _
    // Predicated region
    $region46: #{tpu_custom_call.1} parent=1 // pred_check
      _
    $region47: #{tpu_custom_call.1} parent=1 // pred_check_branch
      %100 = sbr.rel (0) target = $region49
    $region48: #{tpu_custom_call.1} parent=1 // pred_region
      %102 = dma.done [#allocation6], 2048
    $region49: #{tpu_custom_call.1} parent=1 // pred_fallthru
      _
    // Predicated region
    $region50: #{tpu_custom_call.1} parent=1 // pred_check
      _
    $region51: #{tpu_custom_call.1} parent=1 // pred_check_branch
      %104 = sbr.rel (0) target = $region53
    $region52: #{tpu_custom_call.1} parent=1 // pred_region
      %106 = dma.done [#allocation9], 2048
    $region53: #{tpu_custom_call.1} parent=1 // pred_fallthru
      _
    // Predicated region
    $region54: #{tpu_custom_call.1} parent=1 // pred_check
      _
    $region55: #{tpu_custom_call.1} parent=1 // pred_check_branch
      %108 = sbr.rel (0) target = $region57
    $region56: #{tpu_custom_call.1} parent=1 // pred_region
      %110 = dma.done [#allocation9], 2048
    $region57: #{tpu_custom_call.1} parent=1 // pred_fallthru
      _
    %v111 = vld [vmem:[%s0] sm:$0xff]
    %v112 = vld [vmem:[%s0 + $0x8] sm:$0xff]
    %v113 = vld [vmem:[%s0 + $0x10] sm:$0xff]
    %v114 = vld [vmem:[%s0 + $0x18] sm:$0xff]
    %v115 = vld [vmem:[%s0 + $0x20] sm:$0xff]
    %v116 = vld [vmem:[%s0 + $0x28] sm:$0xff]
    %v117 = vld [vmem:[%s0 + $0x30] sm:$0xff]
    %v118 = vld [vmem:[%s0 + $0x38] sm:$0xff]
    %v119 = vld [vmem:[%s1] sm:$0xff]
    %v120 = vld [vmem:[%s1 + $0x8] sm:$0xff]
    %v121 = vld [vmem:[%s2] sm:$0x1]
    %v123 = vperm.slane %v121, 0
    %vm125 = vcmask 130048
    %v127 = vsel %vm125, %v111, 0
    %v130 = vsel %vm125, %v112, 0
    %v133 = vsel %vm125, %v113, 0
    %v136 = vsel %vm125, %v114, 0
    %v139 = vsel %vm125, %v115, 0
    %v142 = vsel %vm125, %v116, 0
    %v145 = vsel %vm125, %v117, 0
    %v148 = vsel %vm125, %v118, 0
    %150 = vmatpush.msra.mxu0 0.0
    %151 = vmatpush.msra.mxu0 0.0
    %152 = vmatpush.msra.mxu0 0.0
    %153 = vmatpush.msra.mxu0 0.0
    %154 = vmatpush.msra.mxu0 0.0
    %155 = vmatpush.msra.mxu0 0.0
    %156 = vmatpush.msra.mxu0 0.0
    %157 = vmatpush.msra.mxu0 0.0
    %158 = vmatpush.msra.mxu0 0.0
    %159 = vmatpush.msra.mxu0 0.0
    %160 = vmatpush.msra.mxu0 0.0
    %161 = vmatpush.msra.mxu0 0.0
    %162 = vmatpush.msra.mxu0 0.0
    %163 = vmatpush.msra.mxu0 0.0
    %164 = vmatpush.msra.mxu0 %v120
    %165 = vmatpush.msra.mxu0 %v119
    %166 = vmatmul.f32.gmra.mxu0 %v127
    %v167 = vpop.f32.mrf.mxu0
    %v168 = vadd.f32 %v123, %v167
    %169 = vmatmul.f32.gmra.mxu0 %v130
    %v170 = vpop.f32.mrf.mxu0
    %v171 = vadd.f32 %v123, %v170
    %172 = vmatmul.f32.gmra.mxu0 %v133
    %v173 = vpop.f32.mrf.mxu0
    %v174 = vadd.f32 %v123, %v173
    %175 = vmatmul.f32.gmra.mxu0 %v136
    %v176 = vpop.f32.mrf.mxu0
    %v177 = vadd.f32 %v123, %v176
    %178 = vmatmul.f32.gmra.mxu0 %v139
    %v179 = vpop.f32.mrf.mxu0
    %v180 = vadd.f32 %v123, %v179
    %181 = vmatmul.f32.gmra.mxu0 %v142
    %v182 = vpop.f32.mrf.mxu0
    %v183 = vadd.f32 %v123, %v182
    %184 = vmatmul.f32.gmra.mxu0 %v145
    %v185 = vpop.f32.mrf.mxu0
    %v186 = vadd.f32 %v123, %v185
    %187 = vmatmul.f32.gmra.mxu0 %v148
    %v188 = vpop.f32.mrf.mxu0
    %v189 = vadd.f32 %v123, %v188
    %190 = vdwg.mxu0
    %v191 = vld [vmem:[#allocation2] sm:$0xff]
    %v192 = vld [vmem:[#allocation2 + $0x8] sm:$0xff]
    %v193 = vld [vmem:[#allocation2 + $0x10] sm:$0xff]
    %v194 = vld [vmem:[#allocation2 + $0x18] sm:$0xff]
    %v195 = vld [vmem:[#allocation2 + $0x20] sm:$0xff]
    %v196 = vld [vmem:[#allocation2 + $0x28] sm:$0xff]
    %v197 = vld [vmem:[#allocation2 + $0x30] sm:$0xff]
    %v198 = vld [vmem:[#allocation2 + $0x38] sm:$0xff]
    %v199 = vld [vmem:[#allocation2 + $0x40] sm:$0xff]
    %v200 = vld [vmem:[#allocation2 + $0x48] sm:$0xff]
    %v201 = vld [vmem:[#allocation2 + $0x50] sm:$0xff]
    %v202 = vld [vmem:[#allocation2 + $0x58] sm:$0xff]
    %v203 = vld [vmem:[#allocation2 + $0x60] sm:$0xff]
    %v204 = vld [vmem:[#allocation2 + $0x68] sm:$0xff]
    %v205 = vld [vmem:[#allocation2 + $0x70] sm:$0xff]
    %v206 = vld [vmem:[#allocation2 + $0x78] sm:$0xff]
    %207 = vmatpush.msra.mxu0 %v206
    %208 = vmatpush.msra.mxu0 %v205
    %209 = vmatpush.msra.mxu0 %v204
    %210 = vmatpush.msra.mxu0 %v203
    %211 = vmatpush.msra.mxu0 %v202
    %212 = vmatpush.msra.mxu0 %v201
    %213 = vmatpush.msra.mxu0 %v200
    %214 = vmatpush.msra.mxu0 %v199
    %215 = vmatpush.msra.mxu0 %v198
    %216 = vmatpush.msra.mxu0 %v197
    %217 = vmatpush.msra.mxu0 %v196
    %218 = vmatpush.msra.mxu0 %v195
    %219 = vmatpush.msra.mxu0 %v194
    %220 = vmatpush.msra.mxu0 %v193
    %221 = vmatpush.msra.mxu0 %v192
    %222 = vmatpush.msra.mxu0 %v191
    %223 = vmatmul.f32.gmra.mxu0 %v168
    %v224 = vpop.f32.mrf.mxu0
    %v225 = vadd.f32 0.0, %v224
    %226 = vmatmul.f32.gmra.mxu0 %v171
    %v227 = vpop.f32.mrf.mxu0
    %v228 = vadd.f32 0.0, %v227
    %229 = vmatmul.f32.gmra.mxu0 %v174
    %v230 = vpop.f32.mrf.mxu0
    %v231 = vadd.f32 0.0, %v230
    %232 = vmatmul.f32.gmra.mxu0 %v177
    %v233 = vpop.f32.mrf.mxu0
    %v234 = vadd.f32 0.0, %v233
    %235 = vmatmul.f32.gmra.mxu0 %v180
    %v236 = vpop.f32.mrf.mxu0
    %v237 = vadd.f32 0.0, %v236
    %238 = vmatmul.f32.gmra.mxu0 %v183
    %v239 = vpop.f32.mrf.mxu0
    %v240 = vadd.f32 0.0, %v239
    %241 = vmatmul.f32.gmra.mxu0 %v186
    %v242 = vpop.f32.mrf.mxu0
    %v243 = vadd.f32 0.0, %v242
    %244 = vmatmul.f32.gmra.mxu0 %v189
    %v245 = vpop.f32.mrf.mxu0
    %v246 = vadd.f32 0.0, %v245
    %247 = vdwg.mxu0
    %v248 = vld [vmem:[#allocation5] sm:$0xff]
    %v249 = vld [vmem:[#allocation5 + $0x8] sm:$0xff]
    %v250 = vld [vmem:[#allocation5 + $0x10] sm:$0xff]
    %v251 = vld [vmem:[#allocation5 + $0x18] sm:$0xff]
    %v252 = vld [vmem:[#allocation5 + $0x20] sm:$0xff]
    %v253 = vld [vmem:[#allocation5 + $0x28] sm:$0xff]
    %v254 = vld [vmem:[#allocation5 + $0x30] sm:$0xff]
    %v255 = vld [vmem:[#allocation5 + $0x38] sm:$0xff]
    %v256 = vld [vmem:[#allocation5 + $0x40] sm:$0xff]
    %v257 = vld [vmem:[#allocation5 + $0x48] sm:$0xff]
    %v258 = vld [vmem:[#allocation5 + $0x50] sm:$0xff]
    %v259 = vld [vmem:[#allocation5 + $0x58] sm:$0xff]
    %v260 = vld [vmem:[#allocation5 + $0x60] sm:$0xff]
    %v261 = vld [vmem:[#allocation5 + $0x68] sm:$0xff]
    %v262 = vld [vmem:[#allocation5 + $0x70] sm:$0xff]
    %v263 = vld [vmem:[#allocation5 + $0x78] sm:$0xff]
    %264 = vmatpush.msra.mxu0 %v263
    %265 = vmatpush.msra.mxu0 %v262
    %266 = vmatpush.msra.mxu0 %v261
    %267 = vmatpush.msra.mxu0 %v260
    %268 = vmatpush.msra.mxu0 %v259
    %269 = vmatpush.msra.mxu0 %v258
    %270 = vmatpush.msra.mxu0 %v257
    %271 = vmatpush.msra.mxu0 %v256
    %272 = vmatpush.msra.mxu0 %v255
    %273 = vmatpush.msra.mxu0 %v254
    %274 = vmatpush.msra.mxu0 %v253
    %275 = vmatpush.msra.mxu0 %v252
    %276 = vmatpush.msra.mxu0 %v251
    %277 = vmatpush.msra.mxu0 %v250
    %278 = vmatpush.msra.mxu0 %v249
    %279 = vmatpush.msra.mxu0 %v248
    %280 = vmatmul.f32.gmra.mxu0 %v225
    %v281 = vpop.f32.mrf.mxu0
    %v282 = vadd.f32 0.0, %v281
    %283 = vmatmul.f32.gmra.mxu0 %v228
    %v284 = vpop.f32.mrf.mxu0
    %v285 = vadd.f32 0.0, %v284
    %286 = vmatmul.f32.gmra.mxu0 %v231
    %v287 = vpop.f32.mrf.mxu0
    %v288 = vadd.f32 0.0, %v287
    %289 = vmatmul.f32.gmra.mxu0 %v234
    %v290 = vpop.f32.mrf.mxu0
    %v291 = vadd.f32 0.0, %v290
    %292 = vmatmul.f32.gmra.mxu0 %v237
    %v293 = vpop.f32.mrf.mxu0
    %v294 = vadd.f32 0.0, %v293
    %295 = vmatmul.f32.gmra.mxu0 %v240
    %v296 = vpop.f32.mrf.mxu0
    %v297 = vadd.f32 0.0, %v296
    %298 = vmatmul.f32.gmra.mxu0 %v243
    %v299 = vpop.f32.mrf.mxu0
    %v300 = vadd.f32 0.0, %v299
    %301 = vmatmul.f32.gmra.mxu0 %v246
    %v302 = vpop.f32.mrf.mxu0
    %v303 = vadd.f32 0.0, %v302
    %304 = vdwg.mxu0
    %v305 = vsub.f32 %v168, %v282
    %v306 = vsub.f32 %v171, %v285
    %v307 = vsub.f32 %v174, %v288
    %v308 = vsub.f32 %v177, %v291
    %v309 = vsub.f32 %v180, %v294
    %v310 = vsub.f32 %v183, %v297
    %v311 = vsub.f32 %v186, %v300
    %v312 = vsub.f32 %v189, %v303
    %v313 = vmul.f32 %v305, %v305
    %v314 = vmul.f32 %v306, %v306
    %v315 = vmul.f32 %v307, %v307
    %v316 = vmul.f32 %v308, %v308
    %v317 = vmul.f32 %v309, %v309
    %v318 = vmul.f32 %v310, %v310
    %v319 = vmul.f32 %v311, %v311
    %v320 = vmul.f32 %v312, %v312
    %321 = vmatpush.msra.mxu0 %v206
    %322 = vmatpush.msra.mxu0 %v205
    %323 = vmatpush.msra.mxu0 %v204
    %324 = vmatpush.msra.mxu0 %v203
    %325 = vmatpush.msra.mxu0 %v202
    %326 = vmatpush.msra.mxu0 %v201
    %327 = vmatpush.msra.mxu0 %v200
    %328 = vmatpush.msra.mxu0 %v199
    %329 = vmatpush.msra.mxu0 %v198
    %330 = vmatpush.msra.mxu0 %v197
    %331 = vmatpush.msra.mxu0 %v196
    %332 = vmatpush.msra.mxu0 %v195
    %333 = vmatpush.msra.mxu0 %v194
    %334 = vmatpush.msra.mxu0 %v193
    %335 = vmatpush.msra.mxu0 %v192
    %336 = vmatpush.msra.mxu0 %v191
    %337 = vmatmul.f32.gmra.mxu0 %v313
    %v338 = vpop.f32.mrf.mxu0
    %v339 = vadd.f32 1e-05, %v338
    %340 = vmatmul.f32.gmra.mxu0 %v314
    %v341 = vpop.f32.mrf.mxu0
    %v342 = vadd.f32 1e-05, %v341
    %343 = vmatmul.f32.gmra.mxu0 %v315
    %v344 = vpop.f32.mrf.mxu0
    %v345 = vadd.f32 1e-05, %v344
    %346 = vmatmul.f32.gmra.mxu0 %v316
    %v347 = vpop.f32.mrf.mxu0
    %v348 = vadd.f32 1e-05, %v347
    %349 = vmatmul.f32.gmra.mxu0 %v317
    %v350 = vpop.f32.mrf.mxu0
    %v351 = vadd.f32 1e-05, %v350
    %352 = vmatmul.f32.gmra.mxu0 %v318
    %v353 = vpop.f32.mrf.mxu0
    %v354 = vadd.f32 1e-05, %v353
    %355 = vmatmul.f32.gmra.mxu0 %v319
    %v356 = vpop.f32.mrf.mxu0
    %v357 = vadd.f32 1e-05, %v356
    %358 = vmatmul.f32.gmra.mxu0 %v320
    %v359 = vpop.f32.mrf.mxu0
    %v360 = vadd.f32 1e-05, %v359
    %361 = vdwg.mxu0
    %v362 = vrsqrt.pop %v339
    %v363 = vmul.f32 %v362, %v339
    %v364 = vmul.f32 %v363, %v362
    %v365 = vmul.f32 0.5, %v364
    %v366 = vsub.f32 1.5, %v365
    %v367 = vmul.f32 %v362, %v366
    %vm368 = vweird.f32 %v339
    %vm369 = vweird.f32 %v362
    %vm370 = vmor %vm368, %vm369
    %v371 = vsel %vm370, %v362, %v367
    %v372 = vrsqrt.pop %v342
    %v373 = vmul.f32 %v372, %v342
    %v374 = vmul.f32 %v373, %v372
    %v375 = vmul.f32 0.5, %v374
    %v376 = vsub.f32 1.5, %v375
    %v377 = vmul.f32 %v372, %v376
    %vm378 = vweird.f32 %v342
    %vm379 = vweird.f32 %v372
    %vm380 = vmor %vm378, %vm379
    %v381 = vsel %vm380, %v372, %v377
    %v382 = vrsqrt.pop %v345
    %v383 = vmul.f32 %v382, %v345
    %v384 = vmul.f32 %v383, %v382
    %v385 = vmul.f32 0.5, %v384
    %v386 = vsub.f32 1.5, %v385
    %v387 = vmul.f32 %v382, %v386
    %vm388 = vweird.f32 %v345
    %vm389 = vweird.f32 %v382
    %vm390 = vmor %vm388, %vm389
    %v391 = vsel %vm390, %v382, %v387
    %v392 = vrsqrt.pop %v348
    %v393 = vmul.f32 %v392, %v348
    %v394 = vmul.f32 %v393, %v392
    %v395 = vmul.f32 0.5, %v394
    %v396 = vsub.f32 1.5, %v395
    %v397 = vmul.f32 %v392, %v396
    %vm398 = vweird.f32 %v348
    %vm399 = vweird.f32 %v392
    %vm400 = vmor %vm398, %vm399
    %v401 = vsel %vm400, %v392, %v397
    %v402 = vrsqrt.pop %v351
    %v403 = vmul.f32 %v402, %v351
    %v404 = vmul.f32 %v403, %v402
    %v405 = vmul.f32 0.5, %v404
    %v406 = vsub.f32 1.5, %v405
    %v407 = vmul.f32 %v402, %v406
    %vm408 = vweird.f32 %v351
    %vm409 = vweird.f32 %v402
    %vm410 = vmor %vm408, %vm409
    %v411 = vsel %vm410, %v402, %v407
    %v412 = vrsqrt.pop %v354
    %v413 = vmul.f32 %v412, %v354
    %v414 = vmul.f32 %v413, %v412
    %v415 = vmul.f32 0.5, %v414
    %v416 = vsub.f32 1.5, %v415
    %v417 = vmul.f32 %v412, %v416
    %vm418 = vweird.f32 %v354
    %vm419 = vweird.f32 %v412
    %vm420 = vmor %vm418, %vm419
    %v421 = vsel %vm420, %v412, %v417
    %v422 = vrsqrt.pop %v357
    %v423 = vmul.f32 %v422, %v357
    %v424 = vmul.f32 %v423, %v422
    %v425 = vmul.f32 0.5, %v424
    %v426 = vsub.f32 1.5, %v425
    %v427 = vmul.f32 %v422, %v426
    %vm428 = vweird.f32 %v357
    %vm429 = vweird.f32 %v422
    %vm430 = vmor %vm428, %vm429
    %v431 = vsel %vm430, %v422, %v427
    %v432 = vrsqrt.pop %v360
    %v433 = vmul.f32 %v432, %v360
    %v434 = vmul.f32 %v433, %v432
    %v435 = vmul.f32 0.5, %v434
    %v436 = vsub.f32 1.5, %v435
    %v437 = vmul.f32 %v432, %v436
    %vm438 = vweird.f32 %v360
    %vm439 = vweird.f32 %v432
    %vm440 = vmor %vm438, %vm439
    %v441 = vsel %vm440, %v432, %v437
    %v442 = vmul.f32 %v339, 0.5
    %v443 = vmul.f32 %v342, 0.5
    %v444 = vmul.f32 %v345, 0.5
    %v445 = vmul.f32 %v348, 0.5
    %v446 = vmul.f32 %v351, 0.5
    %v447 = vmul.f32 %v354, 0.5
    %v448 = vmul.f32 %v357, 0.5
    %v449 = vmul.f32 %v360, 0.5
    %v450 = vmul.f32 %v442, %v371
    %v451 = vmul.f32 %v443, %v381
    %v452 = vmul.f32 %v444, %v391
    %v453 = vmul.f32 %v445, %v401
    %v454 = vmul.f32 %v446, %v411
    %v455 = vmul.f32 %v447, %v421
    %v456 = vmul.f32 %v448, %v431
    %v457 = vmul.f32 %v449, %v441
    %v458 = vmul.f32 %v450, %v371
    %v459 = vmul.f32 %v451, %v381
    %v460 = vmul.f32 %v452, %v391
    %v461 = vmul.f32 %v453, %v401
    %v462 = vmul.f32 %v454, %v411
    %v463 = vmul.f32 %v455, %v421
    %v464 = vmul.f32 %v456, %v431
    %v465 = vmul.f32 %v457, %v441
    %v466 = vsub.f32 1.5, %v458
    %v467 = vsub.f32 1.5, %v459
    %v468 = vsub.f32 1.5, %v460
    %v469 = vsub.f32 1.5, %v461
    %v470 = vsub.f32 1.5, %v462
    %v471 = vsub.f32 1.5, %v463
    %v472 = vsub.f32 1.5, %v464
    %v473 = vsub.f32 1.5, %v465
    %v474 = vmul.f32 %v371, %v466
    %v475 = vmul.f32 %v381, %v467
    %v476 = vmul.f32 %v391, %v468
    %v477 = vmul.f32 %v401, %v469
    %v478 = vmul.f32 %v411, %v470
    %v479 = vmul.f32 %v421, %v471
    %v480 = vmul.f32 %v431, %v472
    %v481 = vmul.f32 %v441, %v473
    %482 = vmatpush.msra.mxu0 %v263
    %483 = vmatpush.msra.mxu0 %v262
    %484 = vmatpush.msra.mxu0 %v261
    %485 = vmatpush.msra.mxu0 %v260
    %486 = vmatpush.msra.mxu0 %v259
    %487 = vmatpush.msra.mxu0 %v258
    %488 = vmatpush.msra.mxu0 %v257
    %489 = vmatpush.msra.mxu0 %v256
    %490 = vmatpush.msra.mxu0 %v255
    %491 = vmatpush.msra.mxu0 %v254
    %492 = vmatpush.msra.mxu0 %v253
    %493 = vmatpush.msra.mxu0 %v252
    %494 = vmatpush.msra.mxu0 %v251
    %495 = vmatpush.msra.mxu0 %v250
    %496 = vmatpush.msra.mxu0 %v249
    %497 = vmatpush.msra.mxu0 %v248
    %498 = vmatmul.f32.gmra.mxu0 %v474
    %v499 = vpop.f32.mrf.mxu0
    %v500 = vadd.f32 0.0, %v499
    %501 = vmatmul.f32.gmra.mxu0 %v475
    %v502 = vpop.f32.mrf.mxu0
    %v503 = vadd.f32 0.0, %v502
    %504 = vmatmul.f32.gmra.mxu0 %v476
    %v505 = vpop.f32.mrf.mxu0
    %v506 = vadd.f32 0.0, %v505
    %507 = vmatmul.f32.gmra.mxu0 %v477
    %v508 = vpop.f32.mrf.mxu0
    %v509 = vadd.f32 0.0, %v508
    %510 = vmatmul.f32.gmra.mxu0 %v478
    %v511 = vpop.f32.mrf.mxu0
    %v512 = vadd.f32 0.0, %v511
    %513 = vmatmul.f32.gmra.mxu0 %v479
    %v514 = vpop.f32.mrf.mxu0
    %v515 = vadd.f32 0.0, %v514
    %516 = vmatmul.f32.gmra.mxu0 %v480
    %v517 = vpop.f32.mrf.mxu0
    %v518 = vadd.f32 0.0, %v517
    %519 = vmatmul.f32.gmra.mxu0 %v481
    %v520 = vpop.f32.mrf.mxu0
    %v521 = vadd.f32 0.0, %v520
    %522 = vdwg.mxu0
    %v523 = vmul.f32 %v305, %v500
    %v524 = vmul.f32 %v306, %v503
    %v525 = vmul.f32 %v307, %v506
    %v526 = vmul.f32 %v308, %v509
    %v527 = vmul.f32 %v309, %v512
    %v528 = vmul.f32 %v310, %v515
    %v529 = vmul.f32 %v311, %v518
    %v530 = vmul.f32 %v312, %v521
    %v531 = vmul.f32 %v523, 0.5
    %v532 = vmul.f32 %v524, 0.5
    %v533 = vmul.f32 %v525, 0.5
    %v534 = vmul.f32 %v526, 0.5
    %v535 = vmul.f32 %v527, 0.5
    %v536 = vmul.f32 %v528, 0.5
    %v537 = vmul.f32 %v529, 0.5
    %v538 = vmul.f32 %v530, 0.5
    %v539 = vmul.f32 %v523, 0.70710677
    %v540 = vmul.f32 %v524, 0.70710677
    %v541 = vmul.f32 %v525, 0.70710677
    %v542 = vmul.f32 %v526, 0.70710677
    %v543 = vmul.f32 %v527, 0.70710677
    %v544 = vmul.f32 %v528, 0.70710677
    %v545 = vmul.f32 %v529, 0.70710677
    %v546 = vmul.f32 %v530, 0.70710677
    %v547 = vand.u32 2147483647, %v539
    %v548 = vand.u32 2147483647, %v540
    %v549 = vand.u32 2147483647, %v541
    %v550 = vand.u32 2147483647, %v542
    %v551 = vand.u32 2147483647, %v543
    %v552 = vand.u32 2147483647, %v544
    %v553 = vand.u32 2147483647, %v545
    %v554 = vand.u32 2147483647, %v546
    %v555 = vmul.f32 %v547, 0.3275911
    %v556 = vmul.f32 %v548, 0.3275911
    %v557 = vmul.f32 %v549, 0.3275911
    %v558 = vmul.f32 %v550, 0.3275911
    %v559 = vmul.f32 %v551, 0.3275911
    %v560 = vmul.f32 %v552, 0.3275911
    %v561 = vmul.f32 %v553, 0.3275911
    %v562 = vmul.f32 %v554, 0.3275911
    %v563 = vadd.f32 %v555, 1.0
    %v564 = vadd.f32 %v556, 1.0
    %v565 = vadd.f32 %v557, 1.0
    %v566 = vadd.f32 %v558, 1.0
    %v567 = vadd.f32 %v559, 1.0
    %v568 = vadd.f32 %v560, 1.0
    %v569 = vadd.f32 %v561, 1.0
    %v570 = vadd.f32 %v562, 1.0
    %v571 = vrcp.pop %v563
    %v572 = vmul.f32 %v563, %v571
    %v573 = vsub.f32 1.0, %v572
    %v574 = vmul.f32 %v571, %v573
    %v575 = vadd.f32 %v571, %v574
    %vm576 = vweird.f32 %v563
    %vm577 = vweird.f32 %v571
    %vm578 = vmor %vm576, %vm577
    %v579 = vsel %vm578, %v571, %v575
    %v580 = vand.u32 2147483647, %v563
    %vm581 = vcmp.eq.f32.partialorder %v580, 8.507059e+37
    %v582 = vand.u32 %v563, 2147483648
    %v583 = vor.u32 1.1754944e-38, %v582
    %v584 = vsel %vm581, %v583, %v579
    %v585 = vmul.f32 1.0, %v584
    %v586 = vrcp.pop %v564
    %v587 = vmul.f32 %v564, %v586
    %v588 = vsub.f32 1.0, %v587
    %v589 = vmul.f32 %v586, %v588
    %v590 = vadd.f32 %v586, %v589
    %vm591 = vweird.f32 %v564
    %vm592 = vweird.f32 %v586
    %vm593 = vmor %vm591, %vm592
    %v594 = vsel %vm593, %v586, %v590
    %v595 = vand.u32 2147483647, %v564
    %vm596 = vcmp.eq.f32.partialorder %v595, 8.507059e+37
    %v597 = vand.u32 %v564, 2147483648
    %v598 = vor.u32 1.1754944e-38, %v597
    %v599 = vsel %vm596, %v598, %v594
    %v600 = vmul.f32 1.0, %v599
    %v601 = vrcp.pop %v565
    %v602 = vmul.f32 %v565, %v601
    %v603 = vsub.f32 1.0, %v602
    %v604 = vmul.f32 %v601, %v603
    %v605 = vadd.f32 %v601, %v604
    %vm606 = vweird.f32 %v565
    %vm607 = vweird.f32 %v601
    %vm608 = vmor %vm606, %vm607
    %v609 = vsel %vm608, %v601, %v605
    %v610 = vand.u32 2147483647, %v565
    %vm611 = vcmp.eq.f32.partialorder %v610, 8.507059e+37
    %v612 = vand.u32 %v565, 2147483648
    %v613 = vor.u32 1.1754944e-38, %v612
    %v614 = vsel %vm611, %v613, %v609
    %v615 = vmul.f32 1.0, %v614
    %v616 = vrcp.pop %v566
    %v617 = vmul.f32 %v566, %v616
    %v618 = vsub.f32 1.0, %v617
    %v619 = vmul.f32 %v616, %v618
    %v620 = vadd.f32 %v616, %v619
    %vm621 = vweird.f32 %v566
    %vm622 = vweird.f32 %v616
    %vm623 = vmor %vm621, %vm622
    %v624 = vsel %vm623, %v616, %v620
    %v625 = vand.u32 2147483647, %v566
    %vm626 = vcmp.eq.f32.partialorder %v625, 8.507059e+37
    %v627 = vand.u32 %v566, 2147483648
    %v628 = vor.u32 1.1754944e-38, %v627
    %v629 = vsel %vm626, %v628, %v624
    %v630 = vmul.f32 1.0, %v629
    %v631 = vrcp.pop %v567
    %v632 = vmul.f32 %v567, %v631
    %v633 = vsub.f32 1.0, %v632
    %v634 = vmul.f32 %v631, %v633
    %v635 = vadd.f32 %v631, %v634
    %vm636 = vweird.f32 %v567
    %vm637 = vweird.f32 %v631
    %vm638 = vmor %vm636, %vm637
    %v639 = vsel %vm638, %v631, %v635
    %v640 = vand.u32 2147483647, %v567
    %vm641 = vcmp.eq.f32.partialorder %v640, 8.507059e+37
    %v642 = vand.u32 %v567, 2147483648
    %v643 = vor.u32 1.1754944e-38, %v642
    %v644 = vsel %vm641, %v643, %v639
    %v645 = vmul.f32 1.0, %v644
    %v646 = vrcp.pop %v568
    %v647 = vmul.f32 %v568, %v646
    %v648 = vsub.f32 1.0, %v647
    %v649 = vmul.f32 %v646, %v648
    %v650 = vadd.f32 %v646, %v649
    %vm651 = vweird.f32 %v568
    %vm652 = vweird.f32 %v646
    %vm653 = vmor %vm651, %vm652
    %v654 = vsel %vm653, %v646, %v650
    %v655 = vand.u32 2147483647, %v568
    %vm656 = vcmp.eq.f32.partialorder %v655, 8.507059e+37
    %v657 = vand.u32 %v568, 2147483648
    %v658 = vor.u32 1.1754944e-38, %v657
    %v659 = vsel %vm656, %v658, %v654
    %v660 = vmul.f32 1.0, %v659
    %v661 = vrcp.pop %v569
    %v662 = vmul.f32 %v569, %v661
    %v663 = vsub.f32 1.0, %v662
    %v664 = vmul.f32 %v661, %v663
    %v665 = vadd.f32 %v661, %v664
    %vm666 = vweird.f32 %v569
    %vm667 = vweird.f32 %v661
    %vm668 = vmor %vm666, %vm667
    %v669 = vsel %vm668, %v661, %v665
    %v670 = vand.u32 2147483647, %v569
    %vm671 = vcmp.eq.f32.partialorder %v670, 8.507059e+37
    %v672 = vand.u32 %v569, 2147483648
    %v673 = vor.u32 1.1754944e-38, %v672
    %v674 = vsel %vm671, %v673, %v669
    %v675 = vmul.f32 1.0, %v674
    %v676 = vrcp.pop %v570
    %v677 = vmul.f32 %v570, %v676
    %v678 = vsub.f32 1.0, %v677
    %v679 = vmul.f32 %v676, %v678
    %v680 = vadd.f32 %v676, %v679
    %vm681 = vweird.f32 %v570
    %vm682 = vweird.f32 %v676
    %vm683 = vmor %vm681, %vm682
    %v684 = vsel %vm683, %v676, %v680
    %v685 = vand.u32 2147483647, %v570
    %vm686 = vcmp.eq.f32.partialorder %v685, 8.507059e+37
    %v687 = vand.u32 %v570, 2147483648
    %v688 = vor.u32 1.1754944e-38, %v687
    %v689 = vsel %vm686, %v688, %v684
    %v690 = vmul.f32 1.0, %v689
    %v691 = vmul.f32 %v585, 1.0614054
    %v692 = vmul.f32 %v600, 1.0614054
    %v693 = vmul.f32 %v615, 1.0614054
    %v694 = vmul.f32 %v630, 1.0614054
    %v695 = vmul.f32 %v645, 1.0614054
    %v696 = vmul.f32 %v660, 1.0614054
    %v697 = vmul.f32 %v675, 1.0614054
    %v698 = vmul.f32 %v690, 1.0614054
    %v699 = vadd.f32 %v691, -1.4531521
    %v700 = vadd.f32 %v692, -1.4531521
    %v701 = vadd.f32 %v693, -1.4531521
    %v702 = vadd.f32 %v694, -1.4531521
    %v703 = vadd.f32 %v695, -1.4531521
    %v704 = vadd.f32 %v696, -1.4531521
    %v705 = vadd.f32 %v697, -1.4531521
    %v706 = vadd.f32 %v698, -1.4531521
    %v707 = vmul.f32 %v699, %v585
    %v708 = vmul.f32 %v700, %v600
    %v709 = vmul.f32 %v701, %v615
    %v710 = vmul.f32 %v702, %v630
    %v711 = vmul.f32 %v703, %v645
    %v712 = vmul.f32 %v704, %v660
    %v713 = vmul.f32 %v705, %v675
    %v714 = vmul.f32 %v706, %v690
    %v715 = vadd.f32 %v707, 1.4214138
    %v716 = vadd.f32 %v708, 1.4214138
    %v717 = vadd.f32 %v709, 1.4214138
    %v718 = vadd.f32 %v710, 1.4214138
    %v719 = vadd.f32 %v711, 1.4214138
    %v720 = vadd.f32 %v712, 1.4214138
    %v721 = vadd.f32 %v713, 1.4214138
    %v722 = vadd.f32 %v714, 1.4214138
    %v723 = vmul.f32 %v715, %v585
    %v724 = vmul.f32 %v716, %v600
    %v725 = vmul.f32 %v717, %v615
    %v726 = vmul.f32 %v718, %v630
    %v727 = vmul.f32 %v719, %v645
    %v728 = vmul.f32 %v720, %v660
    %v729 = vmul.f32 %v721, %v675
    %v730 = vmul.f32 %v722, %v690
    %v731 = vadd.f32 %v723, -0.28449672
    %v732 = vadd.f32 %v724, -0.28449672
    %v733 = vadd.f32 %v725, -0.28449672
    %v734 = vadd.f32 %v726, -0.28449672
    %v735 = vadd.f32 %v727, -0.28449672
    %v736 = vadd.f32 %v728, -0.28449672
    %v737 = vadd.f32 %v729, -0.28449672
    %v738 = vadd.f32 %v730, -0.28449672
    %v739 = vmul.f32 %v731, %v585
    %v740 = vmul.f32 %v732, %v600
    %v741 = vmul.f32 %v733, %v615
    %v742 = vmul.f32 %v734, %v630
    %v743 = vmul.f32 %v735, %v645
    %v744 = vmul.f32 %v736, %v660
    %v745 = vmul.f32 %v737, %v675
    %v746 = vmul.f32 %v738, %v690
    %v747 = vadd.f32 %v739, 0.2548296
    %v748 = vadd.f32 %v740, 0.2548296
    %v749 = vadd.f32 %v741, 0.2548296
    %v750 = vadd.f32 %v742, 0.2548296
    %v751 = vadd.f32 %v743, 0.2548296
    %v752 = vadd.f32 %v744, 0.2548296
    %v753 = vadd.f32 %v745, 0.2548296
    %v754 = vadd.f32 %v746, 0.2548296
    %v755 = vmul.f32 %v747, %v585
    %v756 = vmul.f32 %v748, %v600
    %v757 = vmul.f32 %v749, %v615
    %v758 = vmul.f32 %v750, %v630
    %v759 = vmul.f32 %v751, %v645
    %v760 = vmul.f32 %v752, %v660
    %v761 = vmul.f32 %v753, %v675
    %v762 = vmul.f32 %v754, %v690
    %v763 = vsub.f32 0.0, %v547
    %v764 = vsub.f32 0.0, %v548
    %v765 = vsub.f32 0.0, %v549
    %v766 = vsub.f32 0.0, %v550
    %v767 = vsub.f32 0.0, %v551
    %v768 = vsub.f32 0.0, %v552
    %v769 = vsub.f32 0.0, %v553
    %v770 = vsub.f32 0.0, %v554
    %v771 = vmul.f32 %v763, %v547
    %v772 = vmul.f32 %v764, %v548
    %v773 = vmul.f32 %v765, %v549
    %v774 = vmul.f32 %v766, %v550
    %v775 = vmul.f32 %v767, %v551
    %v776 = vmul.f32 %v768, %v552
    %v777 = vmul.f32 %v769, %v553
    %v778 = vmul.f32 %v770, %v554
    %v779 = vmul.f32 %v771, 1.442695
    %v780 = vpow.pop %v779
    %v781 = vmul.f32 %v772, 1.442695
    %v782 = vpow.pop %v781
    %v783 = vmul.f32 %v773, 1.442695
    %v784 = vpow.pop %v783
    %v785 = vmul.f32 %v774, 1.442695
    %v786 = vpow.pop %v785
    %v787 = vmul.f32 %v775, 1.442695
    %v788 = vpow.pop %v787
    %v789 = vmul.f32 %v776, 1.442695
    %v790 = vpow.pop %v789
    %v791 = vmul.f32 %v777, 1.442695
    %v792 = vpow.pop %v791
    %v793 = vmul.f32 %v778, 1.442695
    %v794 = vpow.pop %v793
    %v795 = vmul.f32 %v755, %v780
    %v796 = vmul.f32 %v756, %v782
    %v797 = vmul.f32 %v757, %v784
    %v798 = vmul.f32 %v758, %v786
    %v799 = vmul.f32 %v759, %v788
    %v800 = vmul.f32 %v760, %v790
    %v801 = vmul.f32 %v761, %v792
    %v802 = vmul.f32 %v762, %v794
    %v803 = vsub.f32 1.0, %v795
    %v804 = vsub.f32 1.0, %v796
    %v805 = vsub.f32 1.0, %v797
    %v806 = vsub.f32 1.0, %v798
    %v807 = vsub.f32 1.0, %v799
    %v808 = vsub.f32 1.0, %v800
    %v809 = vsub.f32 1.0, %v801
    %v810 = vsub.f32 1.0, %v802
    %vm811 = vcmp.ge.f32.partialorder %v539, 0.0
    %vm812 = vcmp.ge.f32.partialorder %v540, 0.0
    %vm813 = vcmp.ge.f32.partialorder %v541, 0.0
    %vm814 = vcmp.ge.f32.partialorder %v542, 0.0
    %vm815 = vcmp.ge.f32.partialorder %v543, 0.0
    %vm816 = vcmp.ge.f32.partialorder %v544, 0.0
    %vm817 = vcmp.ge.f32.partialorder %v545, 0.0
    %vm818 = vcmp.ge.f32.partialorder %v546, 0.0
    %v819 = vsub.f32 0.0, %v803
    %v820 = vsub.f32 0.0, %v804
    %v821 = vsub.f32 0.0, %v805
    %v822 = vsub.f32 0.0, %v806
    %v823 = vsub.f32 0.0, %v807
    %v824 = vsub.f32 0.0, %v808
    %v825 = vsub.f32 0.0, %v809
    %v826 = vsub.f32 0.0, %v810
    %v827 = vsel %vm811, %v803, %v819
    %v828 = vsel %vm812, %v804, %v820
    %v829 = vsel %vm813, %v805, %v821
    %v830 = vsel %vm814, %v806, %v822
    %v831 = vsel %vm815, %v807, %v823
    %v832 = vsel %vm816, %v808, %v824
    %v833 = vsel %vm817, %v809, %v825
    %v834 = vsel %vm818, %v810, %v826
    %v835 = vadd.f32 %v827, 1.0
    %v836 = vadd.f32 %v828, 1.0
    %v837 = vadd.f32 %v829, 1.0
    %v838 = vadd.f32 %v830, 1.0
    %v839 = vadd.f32 %v831, 1.0
    %v840 = vadd.f32 %v832, 1.0
    %v841 = vadd.f32 %v833, 1.0
    %v842 = vadd.f32 %v834, 1.0
    %v843 = vmul.f32 %v531, %v835
    %v844 = vmul.f32 %v532, %v836
    %v845 = vmul.f32 %v533, %v837
    %v846 = vmul.f32 %v534, %v838
    %v847 = vmul.f32 %v535, %v839
    %v848 = vmul.f32 %v536, %v840
    %v849 = vmul.f32 %v537, %v841
    %v850 = vmul.f32 %v538, %v842
    %v851 = vld [vmem:[#allocation7] sm:$0xff]
    %v852 = vld [vmem:[#allocation7 + $0x8] sm:$0xff]
    %v853 = vld [vmem:[#allocation7 + $0x10] sm:$0xff]
    %v854 = vld [vmem:[#allocation7 + $0x18] sm:$0xff]
    %v855 = vld [vmem:[#allocation7 + $0x20] sm:$0xff]
    %v856 = vld [vmem:[#allocation7 + $0x28] sm:$0xff]
    %v857 = vld [vmem:[#allocation7 + $0x30] sm:$0xff]
    %v858 = vld [vmem:[#allocation7 + $0x38] sm:$0xff]
    %v859 = vld [vmem:[#allocation7 + $0x40] sm:$0xff]
    %v860 = vld [vmem:[#allocation7 + $0x48] sm:$0xff]
    %v861 = vld [vmem:[#allocation7 + $0x50] sm:$0xff]
    %v862 = vld [vmem:[#allocation7 + $0x58] sm:$0xff]
    %v863 = vld [vmem:[#allocation7 + $0x60] sm:$0xff]
    %v864 = vld [vmem:[#allocation7 + $0x68] sm:$0xff]
    %v865 = vld [vmem:[#allocation7 + $0x70] sm:$0xff]
    %v866 = vld [vmem:[#allocation7 + $0x78] sm:$0xff]
    %v867 = vld [vmem:[%s6] sm:$0x1]
    %v869 = vperm.slane %v867, 0
    %871 = vmatpush.msra.mxu0 %v866
    %872 = vmatpush.msra.mxu0 %v865
    %873 = vmatpush.msra.mxu0 %v864
    %874 = vmatpush.msra.mxu0 %v863
    %875 = vmatpush.msra.mxu0 %v862
    %876 = vmatpush.msra.mxu0 %v861
    %877 = vmatpush.msra.mxu0 %v860
    %878 = vmatpush.msra.mxu0 %v859
    %879 = vmatpush.msra.mxu0 %v858
    %880 = vmatpush.msra.mxu0 %v857
    %881 = vmatpush.msra.mxu0 %v856
    %882 = vmatpush.msra.mxu0 %v855
    %883 = vmatpush.msra.mxu0 %v854
    %884 = vmatpush.msra.mxu0 %v853
    %885 = vmatpush.msra.mxu0 %v852
    %886 = vmatpush.msra.mxu0 %v851
    %887 = vmatmul.f32.gmra.mxu0 %v843
    %v888 = vpop.f32.mrf.mxu0
    %v889 = vadd.f32 %v869, %v888
    %890 = vmatmul.f32.gmra.mxu0 %v844
    %v891 = vpop.f32.mrf.mxu0
    %v892 = vadd.f32 %v869, %v891
    %893 = vmatmul.f32.gmra.mxu0 %v845
    %v894 = vpop.f32.mrf.mxu0
    %v895 = vadd.f32 %v869, %v894
    %896 = vmatmul.f32.gmra.mxu0 %v846
    %v897 = vpop.f32.mrf.mxu0
    %v898 = vadd.f32 %v869, %v897
    %899 = vmatmul.f32.gmra.mxu0 %v847
    %v900 = vpop.f32.mrf.mxu0
    %v901 = vadd.f32 %v869, %v900
    %902 = vmatmul.f32.gmra.mxu0 %v848
    %v903 = vpop.f32.mrf.mxu0
    %v904 = vadd.f32 %v869, %v903
    %905 = vmatmul.f32.gmra.mxu0 %v849
    %v906 = vpop.f32.mrf.mxu0
    %v907 = vadd.f32 %v869, %v906
    %908 = vmatmul.f32.gmra.mxu0 %v850
    %v909 = vpop.f32.mrf.mxu0
    %v910 = vadd.f32 %v869, %v909
    %911 = vdwg.mxu0
    %v912 = vld [vmem:[#allocation8] sm:$0xff]
    %v913 = vld [vmem:[#allocation8 + $0x8] sm:$0xff]
    %v914 = vld [vmem:[#allocation8 + $0x10] sm:$0xff]
    %v915 = vld [vmem:[#allocation8 + $0x18] sm:$0xff]
    %v916 = vld [vmem:[#allocation8 + $0x20] sm:$0xff]
    %v917 = vld [vmem:[#allocation8 + $0x28] sm:$0xff]
    %v918 = vld [vmem:[#allocation8 + $0x30] sm:$0xff]
    %v919 = vld [vmem:[#allocation8 + $0x38] sm:$0xff]
    %v920 = vld [vmem:[#allocation8 + $0x40] sm:$0xff]
    %v921 = vld [vmem:[#allocation8 + $0x48] sm:$0xff]
    %v922 = vld [vmem:[#allocation8 + $0x50] sm:$0xff]
    %v923 = vld [vmem:[#allocation8 + $0x58] sm:$0xff]
    %v924 = vld [vmem:[#allocation8 + $0x60] sm:$0xff]
    %v925 = vld [vmem:[#allocation8 + $0x68] sm:$0xff]
    %v926 = vld [vmem:[#allocation8 + $0x70] sm:$0xff]
    %v927 = vld [vmem:[#allocation8 + $0x78] sm:$0xff]
    %928 = vmatpush.msra.mxu0 %v927
    %929 = vmatpush.msra.mxu0 %v926
    %930 = vmatpush.msra.mxu0 %v925
    %931 = vmatpush.msra.mxu0 %v924
    %932 = vmatpush.msra.mxu0 %v923
    %933 = vmatpush.msra.mxu0 %v922
    %934 = vmatpush.msra.mxu0 %v921
    %935 = vmatpush.msra.mxu0 %v920
    %936 = vmatpush.msra.mxu0 %v919
    %937 = vmatpush.msra.mxu0 %v918
    %938 = vmatpush.msra.mxu0 %v917
    %939 = vmatpush.msra.mxu0 %v916
    %940 = vmatpush.msra.mxu0 %v915
    %941 = vmatpush.msra.mxu0 %v914
    %942 = vmatpush.msra.mxu0 %v913
    %943 = vmatpush.msra.mxu0 %v912
    %944 = vmatmul.f32.gmra.mxu0 %v889
    %v945 = vpop.f32.mrf.mxu0
    %v946 = vadd.f32 0.0, %v945
    %947 = vmatmul.f32.gmra.mxu0 %v892
    %v948 = vpop.f32.mrf.mxu0
    %v949 = vadd.f32 0.0, %v948
    %950 = vmatmul.f32.gmra.mxu0 %v895
    %v951 = vpop.f32.mrf.mxu0
    %v952 = vadd.f32 0.0, %v951
    %953 = vmatmul.f32.gmra.mxu0 %v898
    %v954 = vpop.f32.mrf.mxu0
    %v955 = vadd.f32 0.0, %v954
    %956 = vmatmul.f32.gmra.mxu0 %v901
    %v957 = vpop.f32.mrf.mxu0
    %v958 = vadd.f32 0.0, %v957
    %959 = vmatmul.f32.gmra.mxu0 %v904
    %v960 = vpop.f32.mrf.mxu0
    %v961 = vadd.f32 0.0, %v960
    %962 = vmatmul.f32.gmra.mxu0 %v907
    %v963 = vpop.f32.mrf.mxu0
    %v964 = vadd.f32 0.0, %v963
    %965 = vmatmul.f32.gmra.mxu0 %v910
    %v966 = vpop.f32.mrf.mxu0
    %v967 = vadd.f32 0.0, %v966
    %968 = vdwg.mxu0
    %v969 = vld [vmem:[#allocation10] sm:$0xff]
    %v970 = vld [vmem:[#allocation10 + $0x8] sm:$0xff]
    %v971 = vld [vmem:[#allocation10 + $0x10] sm:$0xff]
    %v972 = vld [vmem:[#allocation10 + $0x18] sm:$0xff]
    %v973 = vld [vmem:[#allocation10 + $0x20] sm:$0xff]
    %v974 = vld [vmem:[#allocation10 + $0x28] sm:$0xff]
    %v975 = vld [vmem:[#allocation10 + $0x30] sm:$0xff]
    %v976 = vld [vmem:[#allocation10 + $0x38] sm:$0xff]
    %v977 = vld [vmem:[#allocation10 + $0x40] sm:$0xff]
    %v978 = vld [vmem:[#allocation10 + $0x48] sm:$0xff]
    %v979 = vld [vmem:[#allocation10 + $0x50] sm:$0xff]
    %v980 = vld [vmem:[#allocation10 + $0x58] sm:$0xff]
    %v981 = vld [vmem:[#allocation10 + $0x60] sm:$0xff]
    %v982 = vld [vmem:[#allocation10 + $0x68] sm:$0xff]
    %v983 = vld [vmem:[#allocation10 + $0x70] sm:$0xff]
    %v984 = vld [vmem:[#allocation10 + $0x78] sm:$0xff]
    %985 = vmatpush.msra.mxu0 %v984
    %986 = vmatpush.msra.mxu0 %v983
    %987 = vmatpush.msra.mxu0 %v982
    %988 = vmatpush.msra.mxu0 %v981
    %989 = vmatpush.msra.mxu0 %v980
    %990 = vmatpush.msra.mxu0 %v979
    %991 = vmatpush.msra.mxu0 %v978
    %992 = vmatpush.msra.mxu0 %v977
    %993 = vmatpush.msra.mxu0 %v976
    %994 = vmatpush.msra.mxu0 %v975
    %995 = vmatpush.msra.mxu0 %v974
    %996 = vmatpush.msra.mxu0 %v973
    %997 = vmatpush.msra.mxu0 %v972
    %998 = vmatpush.msra.mxu0 %v971
    %999 = vmatpush.msra.mxu0 %v970
    %1000 = vmatpush.msra.mxu0 %v969
    %1001 = vmatmul.f32.gmra.mxu0 %v946
    %v1002 = vpop.f32.mrf.mxu0
    %v1003 = vadd.f32 0.0, %v1002
    %1004 = vmatmul.f32.gmra.mxu0 %v949
    %v1005 = vpop.f32.mrf.mxu0
    %v1006 = vadd.f32 0.0, %v1005
    %1007 = vmatmul.f32.gmra.mxu0 %v952
    %v1008 = vpop.f32.mrf.mxu0
    %v1009 = vadd.f32 0.0, %v1008
    %1010 = vmatmul.f32.gmra.mxu0 %v955
    %v1011 = vpop.f32.mrf.mxu0
    %v1012 = vadd.f32 0.0, %v1011
    %1013 = vmatmul.f32.gmra.mxu0 %v958
    %v1014 = vpop.f32.mrf.mxu0
    %v1015 = vadd.f32 0.0, %v1014
    %1016 = vmatmul.f32.gmra.mxu0 %v961
    %v1017 = vpop.f32.mrf.mxu0
    %v1018 = vadd.f32 0.0, %v1017
    %1019 = vmatmul.f32.gmra.mxu0 %v964
    %v1020 = vpop.f32.mrf.mxu0
    %v1021 = vadd.f32 0.0, %v1020
    %1022 = vmatmul.f32.gmra.mxu0 %v967
    %v1023 = vpop.f32.mrf.mxu0
    %v1024 = vadd.f32 0.0, %v1023
    %1025 = vdwg.mxu0
    %v1026 = vsub.f32 %v889, %v1003
    %v1027 = vsub.f32 %v892, %v1006
    %v1028 = vsub.f32 %v895, %v1009
    %v1029 = vsub.f32 %v898, %v1012
    %v1030 = vsub.f32 %v901, %v1015
    %v1031 = vsub.f32 %v904, %v1018
    %v1032 = vsub.f32 %v907, %v1021
    %v1033 = vsub.f32 %v910, %v1024
    %v1034 = vmul.f32 %v1026, %v1026
    %v1035 = vmul.f32 %v1027, %v1027
    %v1036 = vmul.f32 %v1028, %v1028
    %v1037 = vmul.f32 %v1029, %v1029
    %v1038 = vmul.f32 %v1030, %v1030
    %v1039 = vmul.f32 %v1031, %v1031
    %v1040 = vmul.f32 %v1032, %v1032
    %v1041 = vmul.f32 %v1033, %v1033
    %1042 = vmatpush.msra.mxu0 %v927
    %1043 = vmatpush.msra.mxu0 %v926
    %1044 = vmatpush.msra.mxu0 %v925
    %1045 = vmatpush.msra.mxu0 %v924
    %1046 = vmatpush.msra.mxu0 %v923
    %1047 = vmatpush.msra.mxu0 %v922
    %1048 = vmatpush.msra.mxu0 %v921
    %1049 = vmatpush.msra.mxu0 %v920
    %1050 = vmatpush.msra.mxu0 %v919
    %1051 = vmatpush.msra.mxu0 %v918
    %1052 = vmatpush.msra.mxu0 %v917
    %1053 = vmatpush.msra.mxu0 %v916
    %1054 = vmatpush.msra.mxu0 %v915
    %1055 = vmatpush.msra.mxu0 %v914
    %1056 = vmatpush.msra.mxu0 %v913
    %1057 = vmatpush.msra.mxu0 %v912
    %1058 = vmatmul.f32.gmra.mxu0 %v1034
    %v1059 = vpop.f32.mrf.mxu0
    %v1060 = vadd.f32 1e-05, %v1059
    %1061 = vmatmul.f32.gmra.mxu0 %v1035
    %v1062 = vpop.f32.mrf.mxu0
    %v1063 = vadd.f32 1e-05, %v1062
    %1064 = vmatmul.f32.gmra.mxu0 %v1036
    %v1065 = vpop.f32.mrf.mxu0
    %v1066 = vadd.f32 1e-05, %v1065
    %1067 = vmatmul.f32.gmra.mxu0 %v1037
    %v1068 = vpop.f32.mrf.mxu0
    %v1069 = vadd.f32 1e-05, %v1068
    %1070 = vmatmul.f32.gmra.mxu0 %v1038
    %v1071 = vpop.f32.mrf.mxu0
    %v1072 = vadd.f32 1e-05, %v1071
    %1073 = vmatmul.f32.gmra.mxu0 %v1039
    %v1074 = vpop.f32.mrf.mxu0
    %v1075 = vadd.f32 1e-05, %v1074
    %1076 = vmatmul.f32.gmra.mxu0 %v1040
    %v1077 = vpop.f32.mrf.mxu0
    %v1078 = vadd.f32 1e-05, %v1077
    %1079 = vmatmul.f32.gmra.mxu0 %v1041
    %v1080 = vpop.f32.mrf.mxu0
    %v1081 = vadd.f32 1e-05, %v1080
    %1082 = vdwg.mxu0
    %v1083 = vrsqrt.pop %v1060
    %v1084 = vmul.f32 %v1083, %v1060
    %v1085 = vmul.f32 %v1084, %v1083
    %v1086 = vmul.f32 0.5, %v1085
    %v1087 = vsub.f32 1.5, %v1086
    %v1088 = vmul.f32 %v1083, %v1087
    %vm1089 = vweird.f32 %v1060
    %vm1090 = vweird.f32 %v1083
    %vm1091 = vmor %vm1089, %vm1090
    %v1092 = vsel %vm1091, %v1083, %v1088
    %v1093 = vrsqrt.pop %v1063
    %v1094 = vmul.f32 %v1093, %v1063
    %v1095 = vmul.f32 %v1094, %v1093
    %v1096 = vmul.f32 0.5, %v1095
    %v1097 = vsub.f32 1.5, %v1096
    %v1098 = vmul.f32 %v1093, %v1097
    %vm1099 = vweird.f32 %v1063
    %vm1100 = vweird.f32 %v1093
    %vm1101 = vmor %vm1099, %vm1100
    %v1102 = vsel %vm1101, %v1093, %v1098
    %v1103 = vrsqrt.pop %v1066
    %v1104 = vmul.f32 %v1103, %v1066
    %v1105 = vmul.f32 %v1104, %v1103
    %v1106 = vmul.f32 0.5, %v1105
    %v1107 = vsub.f32 1.5, %v1106
    %v1108 = vmul.f32 %v1103, %v1107
    %vm1109 = vweird.f32 %v1066
    %vm1110 = vweird.f32 %v1103
    %vm1111 = vmor %vm1109, %vm1110
    %v1112 = vsel %vm1111, %v1103, %v1108
    %v1113 = vrsqrt.pop %v1069
    %v1114 = vmul.f32 %v1113, %v1069
    %v1115 = vmul.f32 %v1114, %v1113
    %v1116 = vmul.f32 0.5, %v1115
    %v1117 = vsub.f32 1.5, %v1116
    %v1118 = vmul.f32 %v1113, %v1117
    %vm1119 = vweird.f32 %v1069
    %vm1120 = vweird.f32 %v1113
    %vm1121 = vmor %vm1119, %vm1120
    %v1122 = vsel %vm1121, %v1113, %v1118
    %v1123 = vrsqrt.pop %v1072
    %v1124 = vmul.f32 %v1123, %v1072
    %v1125 = vmul.f32 %v1124, %v1123
    %v1126 = vmul.f32 0.5, %v1125
    %v1127 = vsub.f32 1.5, %v1126
    %v1128 = vmul.f32 %v1123, %v1127
    %vm1129 = vweird.f32 %v1072
    %vm1130 = vweird.f32 %v1123
    %vm1131 = vmor %vm1129, %vm1130
    %v1132 = vsel %vm1131, %v1123, %v1128
    %v1133 = vrsqrt.pop %v1075
    %v1134 = vmul.f32 %v1133, %v1075
    %v1135 = vmul.f32 %v1134, %v1133
    %v1136 = vmul.f32 0.5, %v1135
    %v1137 = vsub.f32 1.5, %v1136
    %v1138 = vmul.f32 %v1133, %v1137
    %vm1139 = vweird.f32 %v1075
    %vm1140 = vweird.f32 %v1133
    %vm1141 = vmor %vm1139, %vm1140
    %v1142 = vsel %vm1141, %v1133, %v1138
    %v1143 = vrsqrt.pop %v1078
    %v1144 = vmul.f32 %v1143, %v1078
    %v1145 = vmul.f32 %v1144, %v1143
    %v1146 = vmul.f32 0.5, %v1145
    %v1147 = vsub.f32 1.5, %v1146
    %v1148 = vmul.f32 %v1143, %v1147
    %vm1149 = vweird.f32 %v1078
    %vm1150 = vweird.f32 %v1143
    %vm1151 = vmor %vm1149, %vm1150
    %v1152 = vsel %vm1151, %v1143, %v1148
    %v1153 = vrsqrt.pop %v1081
    %v1154 = vmul.f32 %v1153, %v1081
    %v1155 = vmul.f32 %v1154, %v1153
    %v1156 = vmul.f32 0.5, %v1155
    %v1157 = vsub.f32 1.5, %v1156
    %v1158 = vmul.f32 %v1153, %v1157
    %vm1159 = vweird.f32 %v1081
    %vm1160 = vweird.f32 %v1153
    %vm1161 = vmor %vm1159, %vm1160
    %v1162 = vsel %vm1161, %v1153, %v1158
    %v1163 = vmul.f32 %v1060, 0.5
    %v1164 = vmul.f32 %v1063, 0.5
    %v1165 = vmul.f32 %v1066, 0.5
    %v1166 = vmul.f32 %v1069, 0.5
    %v1167 = vmul.f32 %v1072, 0.5
    %v1168 = vmul.f32 %v1075, 0.5
    %v1169 = vmul.f32 %v1078, 0.5
    %v1170 = vmul.f32 %v1081, 0.5
    %v1171 = vmul.f32 %v1163, %v1092
    %v1172 = vmul.f32 %v1164, %v1102
    %v1173 = vmul.f32 %v1165, %v1112
    %v1174 = vmul.f32 %v1166, %v1122
    %v1175 = vmul.f32 %v1167, %v1132
    %v1176 = vmul.f32 %v1168, %v1142
    %v1177 = vmul.f32 %v1169, %v1152
    %v1178 = vmul.f32 %v1170, %v1162
    %v1179 = vmul.f32 %v1171, %v1092
    %v1180 = vmul.f32 %v1172, %v1102
    %v1181 = vmul.f32 %v1173, %v1112
    %v1182 = vmul.f32 %v1174, %v1122
    %v1183 = vmul.f32 %v1175, %v1132
    %v1184 = vmul.f32 %v1176, %v1142
    %v1185 = vmul.f32 %v1177, %v1152
    %v1186 = vmul.f32 %v1178, %v1162
    %v1187 = vsub.f32 1.5, %v1179
    %v1188 = vsub.f32 1.5, %v1180
    %v1189 = vsub.f32 1.5, %v1181
    %v1190 = vsub.f32 1.5, %v1182
    %v1191 = vsub.f32 1.5, %v1183
    %v1192 = vsub.f32 1.5, %v1184
    %v1193 = vsub.f32 1.5, %v1185
    %v1194 = vsub.f32 1.5, %v1186
    %v1195 = vmul.f32 %v1092, %v1187
    %v1196 = vmul.f32 %v1102, %v1188
    %v1197 = vmul.f32 %v1112, %v1189
    %v1198 = vmul.f32 %v1122, %v1190
    %v1199 = vmul.f32 %v1132, %v1191
    %v1200 = vmul.f32 %v1142, %v1192
    %v1201 = vmul.f32 %v1152, %v1193
    %v1202 = vmul.f32 %v1162, %v1194
    %1203 = vmatpush.msra.mxu0 %v984
    %1204 = vmatpush.msra.mxu0 %v983
    %1205 = vmatpush.msra.mxu0 %v982
    %1206 = vmatpush.msra.mxu0 %v981
    %1207 = vmatpush.msra.mxu0 %v980
    %1208 = vmatpush.msra.mxu0 %v979
    %1209 = vmatpush.msra.mxu0 %v978
    %1210 = vmatpush.msra.mxu0 %v977
    %1211 = vmatpush.msra.mxu0 %v976
    %1212 = vmatpush.msra.mxu0 %v975
    %1213 = vmatpush.msra.mxu0 %v974
    %1214 = vmatpush.msra.mxu0 %v973
    %1215 = vmatpush.msra.mxu0 %v972
    %1216 = vmatpush.msra.mxu0 %v971
    %1217 = vmatpush.msra.mxu0 %v970
    %1218 = vmatpush.msra.mxu0 %v969
    %1219 = vmatmul.f32.gmra.mxu0 %v1195
    %v1220 = vpop.f32.mrf.mxu0
    %v1221 = vadd.f32 0.0, %v1220
    %1222 = vmatmul.f32.gmra.mxu0 %v1196
    %v1223 = vpop.f32.mrf.mxu0
    %v1224 = vadd.f32 0.0, %v1223
    %1225 = vmatmul.f32.gmra.mxu0 %v1197
    %v1226 = vpop.f32.mrf.mxu0
    %v1227 = vadd.f32 0.0, %v1226
    %1228 = vmatmul.f32.gmra.mxu0 %v1198
    %v1229 = vpop.f32.mrf.mxu0
    %v1230 = vadd.f32 0.0, %v1229
    %1231 = vmatmul.f32.gmra.mxu0 %v1199
    %v1232 = vpop.f32.mrf.mxu0
    %v1233 = vadd.f32 0.0, %v1232
    %1234 = vmatmul.f32.gmra.mxu0 %v1200
    %v1235 = vpop.f32.mrf.mxu0
    %v1236 = vadd.f32 0.0, %v1235
    %1237 = vmatmul.f32.gmra.mxu0 %v1201
    %v1238 = vpop.f32.mrf.mxu0
    %v1239 = vadd.f32 0.0, %v1238
    %1240 = vmatmul.f32.gmra.mxu0 %v1202
    %v1241 = vpop.f32.mrf.mxu0
    %v1242 = vadd.f32 0.0, %v1241
    %1243 = vdwg.mxu0
    %v1244 = vmul.f32 %v1026, %v1221
    %v1245 = vmul.f32 %v1027, %v1224
    %v1246 = vmul.f32 %v1028, %v1227
    %v1247 = vmul.f32 %v1029, %v1230
    %v1248 = vmul.f32 %v1030, %v1233
    %v1249 = vmul.f32 %v1031, %v1236
    %v1250 = vmul.f32 %v1032, %v1239
    %v1251 = vmul.f32 %v1033, %v1242
    %v1252 = vmul.f32 %v1244, 0.5
    %v1253 = vmul.f32 %v1245, 0.5
    %v1254 = vmul.f32 %v1246, 0.5
    %v1255 = vmul.f32 %v1247, 0.5
    %v1256 = vmul.f32 %v1248, 0.5
    %v1257 = vmul.f32 %v1249, 0.5
    %v1258 = vmul.f32 %v1250, 0.5
    %v1259 = vmul.f32 %v1251, 0.5
    %v1260 = vmul.f32 %v1244, 0.70710677
    %v1261 = vmul.f32 %v1245, 0.70710677
    %v1262 = vmul.f32 %v1246, 0.70710677
    %v1263 = vmul.f32 %v1247, 0.70710677
    %v1264 = vmul.f32 %v1248, 0.70710677
    %v1265 = vmul.f32 %v1249, 0.70710677
    %v1266 = vmul.f32 %v1250, 0.70710677
    %v1267 = vmul.f32 %v1251, 0.70710677
    %v1268 = vand.u32 2147483647, %v1260
    %v1269 = vand.u32 2147483647, %v1261
    %v1270 = vand.u32 2147483647, %v1262
    %v1271 = vand.u32 2147483647, %v1263
    %v1272 = vand.u32 2147483647, %v1264
    %v1273 = vand.u32 2147483647, %v1265
    %v1274 = vand.u32 2147483647, %v1266
    %v1275 = vand.u32 2147483647, %v1267
    %v1276 = vmul.f32 %v1268, 0.3275911
    %v1277 = vmul.f32 %v1269, 0.3275911
    %v1278 = vmul.f32 %v1270, 0.3275911
    %v1279 = vmul.f32 %v1271, 0.3275911
    %v1280 = vmul.f32 %v1272, 0.3275911
    %v1281 = vmul.f32 %v1273, 0.3275911
    %v1282 = vmul.f32 %v1274, 0.3275911
    %v1283 = vmul.f32 %v1275, 0.3275911
    %v1284 = vadd.f32 %v1276, 1.0
    %v1285 = vadd.f32 %v1277, 1.0
    %v1286 = vadd.f32 %v1278, 1.0
    %v1287 = vadd.f32 %v1279, 1.0
    %v1288 = vadd.f32 %v1280, 1.0
    %v1289 = vadd.f32 %v1281, 1.0
    %v1290 = vadd.f32 %v1282, 1.0
    %v1291 = vadd.f32 %v1283, 1.0
    %v1292 = vrcp.pop %v1284
    %v1293 = vmul.f32 %v1284, %v1292
    %v1294 = vsub.f32 1.0, %v1293
    %v1295 = vmul.f32 %v1292, %v1294
    %v1296 = vadd.f32 %v1292, %v1295
    %vm1297 = vweird.f32 %v1284
    %vm1298 = vweird.f32 %v1292
    %vm1299 = vmor %vm1297, %vm1298
    %v1300 = vsel %vm1299, %v1292, %v1296
    %v1301 = vand.u32 2147483647, %v1284
    %vm1302 = vcmp.eq.f32.partialorder %v1301, 8.507059e+37
    %v1303 = vand.u32 %v1284, 2147483648
    %v1304 = vor.u32 1.1754944e-38, %v1303
    %v1305 = vsel %vm1302, %v1304, %v1300
    %v1306 = vmul.f32 1.0, %v1305
    %v1307 = vrcp.pop %v1285
    %v1308 = vmul.f32 %v1285, %v1307
    %v1309 = vsub.f32 1.0, %v1308
    %v1310 = vmul.f32 %v1307, %v1309
    %v1311 = vadd.f32 %v1307, %v1310
    %vm1312 = vweird.f32 %v1285
    %vm1313 = vweird.f32 %v1307
    %vm1314 = vmor %vm1312, %vm1313
    %v1315 = vsel %vm1314, %v1307, %v1311
    %v1316 = vand.u32 2147483647, %v1285
    %vm1317 = vcmp.eq.f32.partialorder %v1316, 8.507059e+37
    %v1318 = vand.u32 %v1285, 2147483648
    %v1319 = vor.u32 1.1754944e-38, %v1318
    %v1320 = vsel %vm1317, %v1319, %v1315
    %v1321 = vmul.f32 1.0, %v1320
    %v1322 = vrcp.pop %v1286
    %v1323 = vmul.f32 %v1286, %v1322
    %v1324 = vsub.f32 1.0, %v1323
    %v1325 = vmul.f32 %v1322, %v1324
    %v1326 = vadd.f32 %v1322, %v1325
    %vm1327 = vweird.f32 %v1286
    %vm1328 = vweird.f32 %v1322
    %vm1329 = vmor %vm1327, %vm1328
    %v1330 = vsel %vm1329, %v1322, %v1326
    %v1331 = vand.u32 2147483647, %v1286
    %vm1332 = vcmp.eq.f32.partialorder %v1331, 8.507059e+37
    %v1333 = vand.u32 %v1286, 2147483648
    %v1334 = vor.u32 1.1754944e-38, %v1333
    %v1335 = vsel %vm1332, %v1334, %v1330
    %v1336 = vmul.f32 1.0, %v1335
    %v1337 = vrcp.pop %v1287
    %v1338 = vmul.f32 %v1287, %v1337
    %v1339 = vsub.f32 1.0, %v1338
    %v1340 = vmul.f32 %v1337, %v1339
    %v1341 = vadd.f32 %v1337, %v1340
    %vm1342 = vweird.f32 %v1287
    %vm1343 = vweird.f32 %v1337
    %vm1344 = vmor %vm1342, %vm1343
    %v1345 = vsel %vm1344, %v1337, %v1341
    %v1346 = vand.u32 2147483647, %v1287
    %vm1347 = vcmp.eq.f32.partialorder %v1346, 8.507059e+37
    %v1348 = vand.u32 %v1287, 2147483648
    %v1349 = vor.u32 1.1754944e-38, %v1348
    %v1350 = vsel %vm1347, %v1349, %v1345
    %v1351 = vmul.f32 1.0, %v1350
    %v1352 = vrcp.pop %v1288
    %v1353 = vmul.f32 %v1288, %v1352
    %v1354 = vsub.f32 1.0, %v1353
    %v1355 = vmul.f32 %v1352, %v1354
    %v1356 = vadd.f32 %v1352, %v1355
    %vm1357 = vweird.f32 %v1288
    %vm1358 = vweird.f32 %v1352
    %vm1359 = vmor %vm1357, %vm1358
    %v1360 = vsel %vm1359, %v1352, %v1356
    %v1361 = vand.u32 2147483647, %v1288
    %vm1362 = vcmp.eq.f32.partialorder %v1361, 8.507059e+37
    %v1363 = vand.u32 %v1288, 2147483648
    %v1364 = vor.u32 1.1754944e-38, %v1363
    %v1365 = vsel %vm1362, %v1364, %v1360
    %v1366 = vmul.f32 1.0, %v1365
    %v1367 = vrcp.pop %v1289
    %v1368 = vmul.f32 %v1289, %v1367
    %v1369 = vsub.f32 1.0, %v1368
    %v1370 = vmul.f32 %v1367, %v1369
    %v1371 = vadd.f32 %v1367, %v1370
    %vm1372 = vweird.f32 %v1289
    %vm1373 = vweird.f32 %v1367
    %vm1374 = vmor %vm1372, %vm1373
    %v1375 = vsel %vm1374, %v1367, %v1371
    %v1376 = vand.u32 2147483647, %v1289
    %vm1377 = vcmp.eq.f32.partialorder %v1376, 8.507059e+37
    %v1378 = vand.u32 %v1289, 2147483648
    %v1379 = vor.u32 1.1754944e-38, %v1378
    %v1380 = vsel %vm1377, %v1379, %v1375
    %v1381 = vmul.f32 1.0, %v1380
    %v1382 = vrcp.pop %v1290
    %v1383 = vmul.f32 %v1290, %v1382
    %v1384 = vsub.f32 1.0, %v1383
    %v1385 = vmul.f32 %v1382, %v1384
    %v1386 = vadd.f32 %v1382, %v1385
    %vm1387 = vweird.f32 %v1290
    %vm1388 = vweird.f32 %v1382
    %vm1389 = vmor %vm1387, %vm1388
    %v1390 = vsel %vm1389, %v1382, %v1386
    %v1391 = vand.u32 2147483647, %v1290
    %vm1392 = vcmp.eq.f32.partialorder %v1391, 8.507059e+37
    %v1393 = vand.u32 %v1290, 2147483648
    %v1394 = vor.u32 1.1754944e-38, %v1393
    %v1395 = vsel %vm1392, %v1394, %v1390
    %v1396 = vmul.f32 1.0, %v1395
    %v1397 = vrcp.pop %v1291
    %v1398 = vmul.f32 %v1291, %v1397
    %v1399 = vsub.f32 1.0, %v1398
    %v1400 = vmul.f32 %v1397, %v1399
    %v1401 = vadd.f32 %v1397, %v1400
    %vm1402 = vweird.f32 %v1291
    %vm1403 = vweird.f32 %v1397
    %vm1404 = vmor %vm1402, %vm1403
    %v1405 = vsel %vm1404, %v1397, %v1401
    %v1406 = vand.u32 2147483647, %v1291
    %vm1407 = vcmp.eq.f32.partialorder %v1406, 8.507059e+37
    %v1408 = vand.u32 %v1291, 2147483648
    %v1409 = vor.u32 1.1754944e-38, %v1408
    %v1410 = vsel %vm1407, %v1409, %v1405
    %v1411 = vmul.f32 1.0, %v1410
    %v1412 = vmul.f32 %v1306, 1.0614054
    %v1413 = vmul.f32 %v1321, 1.0614054
    %v1414 = vmul.f32 %v1336, 1.0614054
    %v1415 = vmul.f32 %v1351, 1.0614054
    %v1416 = vmul.f32 %v1366, 1.0614054
    %v1417 = vmul.f32 %v1381, 1.0614054
    %v1418 = vmul.f32 %v1396, 1.0614054
    %v1419 = vmul.f32 %v1411, 1.0614054
    %v1420 = vadd.f32 %v1412, -1.4531521
    %v1421 = vadd.f32 %v1413, -1.4531521
    %v1422 = vadd.f32 %v1414, -1.4531521
    %v1423 = vadd.f32 %v1415, -1.4531521
    %v1424 = vadd.f32 %v1416, -1.4531521
    %v1425 = vadd.f32 %v1417, -1.4531521
    %v1426 = vadd.f32 %v1418, -1.4531521
    %v1427 = vadd.f32 %v1419, -1.4531521
    %v1428 = vmul.f32 %v1420, %v1306
    %v1429 = vmul.f32 %v1421, %v1321
    %v1430 = vmul.f32 %v1422, %v1336
    %v1431 = vmul.f32 %v1423, %v1351
    %v1432 = vmul.f32 %v1424, %v1366
    %v1433 = vmul.f32 %v1425, %v1381
    %v1434 = vmul.f32 %v1426, %v1396
    %v1435 = vmul.f32 %v1427, %v1411
    %v1436 = vadd.f32 %v1428, 1.4214138
    %v1437 = vadd.f32 %v1429, 1.4214138
    %v1438 = vadd.f32 %v1430, 1.4214138
    %v1439 = vadd.f32 %v1431, 1.4214138
    %v1440 = vadd.f32 %v1432, 1.4214138
    %v1441 = vadd.f32 %v1433, 1.4214138
    %v1442 = vadd.f32 %v1434, 1.4214138
    %v1443 = vadd.f32 %v1435, 1.4214138
    %v1444 = vmul.f32 %v1436, %v1306
    %v1445 = vmul.f32 %v1437, %v1321
    %v1446 = vmul.f32 %v1438, %v1336
    %v1447 = vmul.f32 %v1439, %v1351
    %v1448 = vmul.f32 %v1440, %v1366
    %v1449 = vmul.f32 %v1441, %v1381
    %v1450 = vmul.f32 %v1442, %v1396
    %v1451 = vmul.f32 %v1443, %v1411
    %v1452 = vadd.f32 %v1444, -0.28449672
    %v1453 = vadd.f32 %v1445, -0.28449672
    %v1454 = vadd.f32 %v1446, -0.28449672
    %v1455 = vadd.f32 %v1447, -0.28449672
    %v1456 = vadd.f32 %v1448, -0.28449672
    %v1457 = vadd.f32 %v1449, -0.28449672
    %v1458 = vadd.f32 %v1450, -0.28449672
    %v1459 = vadd.f32 %v1451, -0.28449672
    %v1460 = vmul.f32 %v1452, %v1306
    %v1461 = vmul.f32 %v1453, %v1321
    %v1462 = vmul.f32 %v1454, %v1336
    %v1463 = vmul.f32 %v1455, %v1351
    %v1464 = vmul.f32 %v1456, %v1366
    %v1465 = vmul.f32 %v1457, %v1381
    %v1466 = vmul.f32 %v1458, %v1396
    %v1467 = vmul.f32 %v1459, %v1411
    %v1468 = vadd.f32 %v1460, 0.2548296
    %v1469 = vadd.f32 %v1461, 0.2548296
    %v1470 = vadd.f32 %v1462, 0.2548296
    %v1471 = vadd.f32 %v1463, 0.2548296
    %v1472 = vadd.f32 %v1464, 0.2548296
    %v1473 = vadd.f32 %v1465, 0.2548296
    %v1474 = vadd.f32 %v1466, 0.2548296
    %v1475 = vadd.f32 %v1467, 0.2548296
    %v1476 = vmul.f32 %v1468, %v1306
    %v1477 = vmul.f32 %v1469, %v1321
    %v1478 = vmul.f32 %v1470, %v1336
    %v1479 = vmul.f32 %v1471, %v1351
    %v1480 = vmul.f32 %v1472, %v1366
    %v1481 = vmul.f32 %v1473, %v1381
    %v1482 = vmul.f32 %v1474, %v1396
    %v1483 = vmul.f32 %v1475, %v1411
    %v1484 = vsub.f32 0.0, %v1268
    %v1485 = vsub.f32 0.0, %v1269
    %v1486 = vsub.f32 0.0, %v1270
    %v1487 = vsub.f32 0.0, %v1271
    %v1488 = vsub.f32 0.0, %v1272
    %v1489 = vsub.f32 0.0, %v1273
    %v1490 = vsub.f32 0.0, %v1274
    %v1491 = vsub.f32 0.0, %v1275
    %v1492 = vmul.f32 %v1484, %v1268
    %v1493 = vmul.f32 %v1485, %v1269
    %v1494 = vmul.f32 %v1486, %v1270
    %v1495 = vmul.f32 %v1487, %v1271
    %v1496 = vmul.f32 %v1488, %v1272
    %v1497 = vmul.f32 %v1489, %v1273
    %v1498 = vmul.f32 %v1490, %v1274
    %v1499 = vmul.f32 %v1491, %v1275
    %v1500 = vmul.f32 %v1492, 1.442695
    %v1501 = vpow.pop %v1500
    %v1502 = vmul.f32 %v1493, 1.442695
    %v1503 = vpow.pop %v1502
    %v1504 = vmul.f32 %v1494, 1.442695
    %v1505 = vpow.pop %v1504
    %v1506 = vmul.f32 %v1495, 1.442695
    %v1507 = vpow.pop %v1506
    %v1508 = vmul.f32 %v1496, 1.442695
    %v1509 = vpow.pop %v1508
    %v1510 = vmul.f32 %v1497, 1.442695
    %v1511 = vpow.pop %v1510
    %v1512 = vmul.f32 %v1498, 1.442695
    %v1513 = vpow.pop %v1512
    %v1514 = vmul.f32 %v1499, 1.442695
    %v1515 = vpow.pop %v1514
    %v1516 = vmul.f32 %v1476, %v1501
    %v1517 = vmul.f32 %v1477, %v1503
    %v1518 = vmul.f32 %v1478, %v1505
    %v1519 = vmul.f32 %v1479, %v1507
    %v1520 = vmul.f32 %v1480, %v1509
    %v1521 = vmul.f32 %v1481, %v1511
    %v1522 = vmul.f32 %v1482, %v1513
    %v1523 = vmul.f32 %v1483, %v1515
    %v1524 = vsub.f32 1.0, %v1516
    %v1525 = vsub.f32 1.0, %v1517
    %v1526 = vsub.f32 1.0, %v1518
    %v1527 = vsub.f32 1.0, %v1519
    %v1528 = vsub.f32 1.0, %v1520
    %v1529 = vsub.f32 1.0, %v1521
    %v1530 = vsub.f32 1.0, %v1522
    %v1531 = vsub.f32 1.0, %v1523
    %vm1532 = vcmp.ge.f32.partialorder %v1260, 0.0
    %vm1533 = vcmp.ge.f32.partialorder %v1261, 0.0
    %vm1534 = vcmp.ge.f32.partialorder %v1262, 0.0
    %vm1535 = vcmp.ge.f32.partialorder %v1263, 0.0
    %vm1536 = vcmp.ge.f32.partialorder %v1264, 0.0
    %vm1537 = vcmp.ge.f32.partialorder %v1265, 0.0
    %vm1538 = vcmp.ge.f32.partialorder %v1266, 0.0
    %vm1539 = vcmp.ge.f32.partialorder %v1267, 0.0
    %v1540 = vsub.f32 0.0, %v1524
    %v1541 = vsub.f32 0.0, %v1525
    %v1542 = vsub.f32 0.0, %v1526
    %v1543 = vsub.f32 0.0, %v1527
    %v1544 = vsub.f32 0.0, %v1528
    %v1545 = vsub.f32 0.0, %v1529
    %v1546 = vsub.f32 0.0, %v1530
    %v1547 = vsub.f32 0.0, %v1531
    %v1548 = vsel %vm1532, %v1524, %v1540
    %v1549 = vsel %vm1533, %v1525, %v1541
    %v1550 = vsel %vm1534, %v1526, %v1542
    %v1551 = vsel %vm1535, %v1527, %v1543
    %v1552 = vsel %vm1536, %v1528, %v1544
    %v1553 = vsel %vm1537, %v1529, %v1545
    %v1554 = vsel %vm1538, %v1530, %v1546
    %v1555 = vsel %vm1539, %v1531, %v1547
    %v1556 = vadd.f32 %v1548, 1.0
    %v1557 = vadd.f32 %v1549, 1.0
    %v1558 = vadd.f32 %v1550, 1.0
    %v1559 = vadd.f32 %v1551, 1.0
    %v1560 = vadd.f32 %v1552, 1.0
    %v1561 = vadd.f32 %v1553, 1.0
    %v1562 = vadd.f32 %v1554, 1.0
    %v1563 = vadd.f32 %v1555, 1.0
    %v1564 = vmul.f32 %v1252, %v1556
    %v1565 = vmul.f32 %v1253, %v1557
    %v1566 = vmul.f32 %v1254, %v1558
    %v1567 = vmul.f32 %v1255, %v1559
    %v1568 = vmul.f32 %v1256, %v1560
    %v1569 = vmul.f32 %v1257, %v1561
    %v1570 = vmul.f32 %v1258, %v1562
    %v1571 = vmul.f32 %v1259, %v1563
    %1572 = vst [vmem:[#allocation11] sm:$0xff] %v1564
    %1573 = vst [vmem:[#allocation11 + $0x8] sm:$0xff] %v1565
    %1574 = vst [vmem:[#allocation11 + $0x10] sm:$0xff] %v1566
    %1575 = vst [vmem:[#allocation11 + $0x18] sm:$0xff] %v1567
    %1576 = vst [vmem:[#allocation11 + $0x20] sm:$0xff] %v1568
    %1577 = vst [vmem:[#allocation11 + $0x28] sm:$0xff] %v1569
    %1578 = vst [vmem:[#allocation11 + $0x30] sm:$0xff] %v1570
    %1579 = vst [vmem:[#allocation11 + $0x38] sm:$0xff] %v1571
    // Predicated region
    $region58: #{tpu_custom_call.1} parent=1 // pred_check
      _
    $region59: #{tpu_custom_call.1} parent=1 // pred_check_branch
      %1581 = sbr.rel (0) target = $region61
    $region60: #{tpu_custom_call.1} parent=1 // pred_region
      %1583 = vsyncadd [#allocation4], 0
      %s1584 = sshll.u32 [#allocation11], 4
      %s1585 = int_to_ptr.vmem [resolvable:$true] %s1584
      %s1586 = sshll.u32 %s9, 4
      %s1587 = int_to_ptr.hbm [resolvable:$true] %s1586
      %1592 = dma.vmem_to_hbm [thread:$0]  %s1585, 1024, %s1587, [#allocation4], 128, 128, 8
    $region61: #{tpu_custom_call.1} parent=1 // pred_fallthru
      _
    // Predicated region
    $region62: #{tpu_custom_call.1} parent=1 // pred_check
      _
    $region63: #{tpu_custom_call.1} parent=1 // pred_check_branch
      %1594 = sbr.rel (0) target = $region65
    $region64: #{tpu_custom_call.1} parent=1 // pred_region
      %1596 = dma.done [#allocation4], 1024
    $region65: #{tpu_custom_call.1} parent=1 // pred_fallthru
      _
    %1597 = vsyncpa [#allocation3], 1
    %1598 = vsyncpa [#allocation6], 1
    %1599 = vsyncpa [#allocation9], 1
    %1600 = vsyncpa [#allocation4], 1

</llo_original>
